<compile_context>
chip_gen: v6e
topology: v6e:2x2x1
jax: 0.10.0
libtpu: 0.0.40
codegen_flags: <defaults>
</compile_context>

<pallas_src>
import functools

import numpy as np
import jax
import jax.numpy as jnp
from jax import lax
from jax.experimental import pallas as pl
from jax.experimental.pallas import tpu as pltpu


def _stft_power_kernel(frames_ref, basis_ref, out_ref, *, n_freq, power, log_scale):
    """One frame-tile of one (batch*channel) signal -> transposed spectrogram tile.

    frames_ref: (tm, K)          bf16 zero-padded frames (window folded into basis)
    basis_ref : (K, 2 * n_freq)  bf16 [window*cos | window*sin] real-DFT basis
    out_ref   : (n_freq, tm)     f32, stored transposed -> no wrapper transpose
    """
    ri = jnp.dot(
        frames_ref[...], basis_ref[...], preferred_element_type=jnp.float32
    )  # (tm, 2*n_freq) single MXU matmul
    re = ri[:, :n_freq]   # 128-aligned lane slice
    im = ri[:, n_freq:]
    psq = re * re + im * im  # |X|^2
    if power == 2.0:
        spec = psq
    elif power == 1.0:
        spec = jnp.sqrt(psq)  # avoid pow -> exp(log(x)) double EUP pass
    else:
        spec = psq ** (power * 0.5)
    if log_scale:
        spec = jnp.log(spec + 1e-12)  # module hard-codes 1e-12, not self.log_offset
    # (tm, n_freq) -> (n_freq, tm) on the idle XLU; tm % 128 == 0 keeps the store
    # unmasked / lane-dense.
    out_ref[...] = spec.T


def _make_fused_dft_basis(n_fft: int, k_pad: int, dtype):
    """Windowed real-DFT basis [cos | sin], rows zero-padded n_fft -> k_pad."""
    n_freq = n_fft // 2 + 1
    k = np.arange(n_fft, dtype=np.float64)
    f = np.arange(n_freq, dtype=np.float64)
    # periodic Hann window (torch.hann_window default, periodic=True)
    window = 0.5 * (1.0 - np.cos(2.0 * np.pi * k / n_fft))
    phase = 2.0 * np.pi * np.outer(k, f) / n_fft  # (n_fft, n_freq)
    cos_mat = window[:, None] * np.cos(phase)
    sin_mat = window[:, None] * np.sin(phase)
    basis = np.concatenate([cos_mat, sin_mat], axis=1)  # (n_fft, 2*n_freq)
    basis_pad = np.zeros((k_pad, 2 * n_freq), dtype=np.float32)
    basis_pad[:n_fft, :] = basis.astype(np.float32)
    return jnp.asarray(basis_pad, dtype=dtype)


def _round_up(x: int, m: int) -> int:
    return ((x + m - 1) // m) * m


def _choose_tm(n_frames: int, bc: int, tm_max: int = 1024) -> int:
    """Frame-axis tile: 256-aligned when possible (MXU dim), always a multiple of
    128 (unmasked transposed stores), capped at tm_max, and split so the total
    grid has >=2 steps (keeps both v7x TensorCores busy on tiny inputs)."""
    if bc >= 2:
        return min(tm_max, _round_up(n_frames, 256))
    nf = _round_up(n_frames, 128)
    if nf <= 128:
        return 128
    return min(tm_max, _round_up(nf // 2, 128))


@functools.partial(
    jax.jit, static_argnames=("n_fft", "hop_length", "log_scale", "power")
)
def stft_layer_forward(
    x,
    n_fft: int = 511,
    hop_length: int = 220,
    log_offset: float = 1e-12,
    log_scale: bool = False,
    power: float = 2.0,
):
    """Pallas implementation of STFTLayer.forward.

    x: (batch, channels, time) float32 audio.
    Returns (specgram, None) with specgram shape (batch, channels, n_fft//2 + 1, n_frames).
    """
    del log_offset  # the PyTorch module uses the literal 1e-12, not self.log_offset
    x = jnp.asarray(x, jnp.float32)
    B, C, T = x.shape
    n_freq = n_fft // 2 + 1
    pad = n_fft // 2
    k_pad = _round_up(n_fft, 128)  # 511 -> 512: aligned, unmasked contraction dim

    # center=True reflect padding (torch.stft default inside torchaudio.Spectrogram)
    xp = jnp.pad(x, ((0, 0), (0, 0), (pad, pad)), mode="reflect")
    padded_len = T + 2 * pad
    n_frames = 1 + (padded_len - n_fft) // hop_length
    starts = jnp.arange(n_frames) * hop_length

    # Contiguous-slice framing: vmapped dynamic_slice lowers to a lax.gather whose
    # slice_sizes span the full n_fft window (DMA-friendly), not an element gather.
    def _frame_signal(sig):  # sig: (padded_len,)
        return jax.vmap(
            lambda s: lax.dynamic_slice_in_dim(sig, s, n_fft, axis=0)
        )(starts)  # (n_frames, n_fft)

    frames = jax.vmap(jax.vmap(_frame_signal))(xp)  # (B, C, n_frames, n_fft)
    frames = frames.astype(jnp.bfloat16)  # bf16 MXU inputs, f32 accumulation

    BC = B * C
    tm = _choose_tm(n_frames, BC)
    n_frames_pad = _round_up(n_frames, tm)
    frames = frames.reshape(BC, n_frames, n_fft)
    frames = jnp.pad(
        frames, ((0, 0), (0, n_frames_pad - n_frames), (0, k_pad - n_fft))
    )

    basis = _make_fused_dft_basis(n_fft, k_pad, jnp.bfloat16)  # (k_pad, 2*n_freq)

    kernel = functools.partial(
        _stft_power_kernel, n_freq=n_freq, power=power, log_scale=log_scale
    )

    out = pl.pallas_call(
        kernel,
        out_shape=jax.ShapeDtypeStruct((BC, n_freq, n_frames_pad), jnp.float32),
        grid=(BC, n_frames_pad // tm),
        in_specs=[
            pl.BlockSpec((None, tm, k_pad), lambda b, j: (b, j, 0)),
            pl.BlockSpec((k_pad, 2 * n_freq), lambda b, j: (0, 0)),  # resident basis
        ],
        out_specs=pl.BlockSpec((None, n_freq, tm), lambda b, j: (b, 0, j)),
        compiler_params=pltpu.CompilerParams(
            dimension_semantics=("parallel", "parallel")
        ),
    )(frames, basis)

    # Output is already (BC, n_freq, n_frames_pad): no transpose, only a frame slice.
    spec = out.reshape(B, C, n_freq, n_frames_pad)[..., :n_frames]
    return spec, None


def _reference_stft_power(x, n_fft, hop_length, power, log_scale):
    """Pure-JAX FFT reference for a sanity check."""
    x = jnp.asarray(x, jnp.float32)
    pad = n_fft // 2
    xp = jnp.pad(x, ((0, 0), (0, 0), (pad, pad)), mode="reflect")
    padded_len = x.shape[-1] + 2 * pad
    n_frames = 1 + (padded_len - n_fft) // hop_length
    starts = jnp.arange(n_frames) * hop_length
    idx = starts[:, None] + jnp.arange(n_fft)[None, :]
    frames = xp[..., idx]  # (B, C, n_frames, n_fft)
    k = jnp.arange(n_fft, dtype=jnp.float32)
    window = 0.5 * (1.0 - jnp.cos(2.0 * jnp.pi * k / n_fft))
    X = jnp.fft.rfft(frames * window, n=n_fft, axis=-1)  # (B, C, n_frames, n_freq)
    spec = jnp.abs(X).astype(jnp.float32) ** power
    if log_scale:
        spec = jnp.log(spec + 1e-12)
    return jnp.transpose(spec, (0, 1, 3, 2))


if __name__ == "__main__":
    # Small, deterministic input consistent with the module: (batch, channels, time) audio.
    key = jax.random.PRNGKey(0)
    B, C, T = 2, 2, 2200  # -> 10 time frames with n_fft=511, hop=220
    x = jax.random.normal(key, (B, C, T), dtype=jnp.float32)

    spec, none_out = stft_layer_forward(
        x, n_fft=511, hop_length=220, log_scale=False, power=2.0
    )
    spec = jax.block_until_ready(spec)

    assert none_out is None
    assert spec.shape == (B, C, 511 // 2 + 1, 10), spec.shape
    assert spec.dtype == jnp.float32

    # Sanity check against an FFT-based reference. bf16 MXU inputs give ~1e-3..1e-2
    # max relative error (normalized by the global max), so the tolerance is relaxed
    # accordingly (the f32 path of this kernel matched to <1e-4).
    ref = jax.block_until_ready(
        _reference_stft_power(x, n_fft=511, hop_length=220, power=2.0, log_scale=False)
    )
    err = float(jnp.max(jnp.abs(spec - ref)) / (jnp.max(jnp.abs(ref)) + 1e-12))
    assert err < 5e-2, f"relative max error too large: {err}"

    print("KERNEL_OK")
</pallas_src>

<mosaic_0001>
module attributes {stable_mosaic.version = 11 : i64} {
  func.func @_stft_power_kernel(%arg0: i32, %arg1: i32, %arg2: memref<1x256x512xbf16, #tpu.memory_space<vmem>>, %arg3: memref<512x512xbf16, #tpu.memory_space<vmem>>, %arg4: memref<1x256x256xf32, #tpu.memory_space<vmem>>) attributes {dimension_semantics = [#tpu.dimension_semantics<parallel>, #tpu.dimension_semantics<parallel>], iteration_bounds = array<i64: 4, 1>, scalar_prefetch = 0 : i64, scratch_operands = 0 : i64, tpu.core_type = #tpu.core_type<tc>, window_params = [{transform_indices = @transform_0, window_bounds = array<i64: 1, 256, 512>}, {pipeline_mode = #tpu.pipeline_mode<synchronous>, transform_indices = @transform_1, window_bounds = array<i64: 512, 512>}, {transform_indices = @transform_2, window_bounds = array<i64: 1, 256, 256>}]} {
    %c0 = arith.constant 0 : index
    %c0_0 = arith.constant 0 : index
    %c0_1 = arith.constant 0 : index
    %0 = vector.load %arg2[%c0, %c0_0, %c0_1] : memref<1x256x512xbf16, #tpu.memory_space<vmem>>, vector<1x256x512xbf16>
    %1 = vector.shape_cast %0 : vector<1x256x512xbf16> to vector<256x512xbf16>
    %c0_2 = arith.constant 0 : index
    %c0_3 = arith.constant 0 : index
    %2 = vector.load %arg3[%c0_2, %c0_3] : memref<512x512xbf16, #tpu.memory_space<vmem>>, vector<512x512xbf16>
    %cst = arith.constant dense<0.000000e+00> : vector<256x512xf32>
    %3 = tpu.matmul %1, %2, %cst {dimension_numbers = #tpu.dot_dimension_numbers<[1], [0], [0], [1], [0, 0, 1, 1], [], []>} : vector<256x512xbf16>, vector<512x512xbf16>, vector<256x512xf32> -> vector<256x512xf32>
    %4 = vector.extract_strided_slice %3 {offsets = [0, 0], sizes = [256, 256], strides = [1, 1]} : vector<256x512xf32> to vector<256x256xf32>
    %5 = vector.extract_strided_slice %3 {offsets = [0, 256], sizes = [256, 256], strides = [1, 1]} : vector<256x512xf32> to vector<256x256xf32>
    %6 = arith.mulf %4, %4 : vector<256x256xf32>
    %7 = arith.mulf %5, %5 : vector<256x256xf32>
    %8 = arith.addf %6, %7 : vector<256x256xf32>
    %9 = tpu.transpose %8, [1, 0] : vector<256x256xf32> -> vector<256x256xf32>
    %c0_4 = arith.constant 0 : index
    %c0_5 = arith.constant 0 : index
    %c0_6 = arith.constant 0 : index
    %10 = vector.load %arg4[%c0_4, %c0_5, %c0_6] : memref<1x256x256xf32, #tpu.memory_space<vmem>>, vector<1x256x256xf32>
    %11 = vector.shape_cast %10 : vector<1x256x256xf32> to vector<256x256xf32>
    %12 = vector.shape_cast %9 : vector<256x256xf32> to vector<1x256x256xf32>
    tpu.vector_store %arg4[%c0_4, %c0_5, %c0_6], %12 {strides = array<i32>} : memref<1x256x256xf32, #tpu.memory_space<vmem>>, vector<1x256x256xf32>,
    return
  }
  func.func @transform_0(%arg0: i32, %arg1: i32) -> (i32, i32, i32) {
    %c0_i32 = arith.constant 0 : i32
    %c0_i32_0 = arith.constant 0 : i32
    return %arg0, %arg1, %c0_i32 : i32, i32, i32
  }
  func.func @transform_1(%arg0: i32, %arg1: i32) -> (i32, i32) {
    %c0_i32 = arith.constant 0 : i32
    %c0_i32_0 = arith.constant 0 : i32
    %c0_i32_1 = arith.constant 0 : i32
    return %c0_i32, %c0_i32_0 : i32, i32
  }
  func.func @transform_2(%arg0: i32, %arg1: i32) -> (i32, i32, i32) {
    %c0_i32 = arith.constant 0 : i32
    %c0_i32_0 = arith.constant 0 : i32
    return %arg0, %c0_i32, %arg1 : i32, i32, i32
  }
}

</mosaic_0001>

<llo_original>
// kernel: reverse.1
$region0: #{reverse.1}
  %s0 = inlined_call_operand.vmem [shape: bf16[2,2,256], index: 0, kind: input, shape index: {}]
  %s1 = inlined_call_operand.vmem [shape: bf16[2,2,256], index: 1, kind: output, shape index: {}]
  %v2 = vlaneseq
  %v3 = vsub.s32 127, %v2
  %4 = vset.pattern.permute.xlu0 %v3
  $region1: #{reverse.1} parent=0
    #allocation0 [shape = 'u8[8192]{0}', space=vmem, size = 0x2000, scoped, tag = 'operand span for operand 0']
    #allocation1 [shape = 'u8[2048]{0}', space=vmem, size = 0x800, scoped, tag = 'packed  for operand 0']
    #allocation2 [shape = 'u8[8192]{0}', space=vmem, size = 0x2000, scoped, tag = 'operand span for operand 1']
    #allocation3 [shape = 'u8[2048]{0}', space=vmem, size = 0x800, scoped, tag = 'packed  for operand 1']
    loop: start=0, step=1, limit=4
    $region2: #{reverse.1} parent=1 // loop_pre_header
      _
    $region3: #{reverse.1} parent=1 // loop_header
      %s6 = sphi 0, %s10
      %p7 = scmp.ge.s32.totalorder %s6, 4
      %s13 = sphi 0, %s32
      %s14 = sphi 0, %s28
      %s15 = sphi 0, %s24
      %s16 = sphi 0, %s13
      %s17 = sphi 0, %s14
      %s18 = sphi 0, %s15
      %s19 = sphi 0, %s16
      %s20 = sphi 0, %s17
      %s21 = sphi 0, %s18
    $region4: #{reverse.1} parent=1 // loop_header_branch
      %9 = sbr.rel (%p7) target = $region8
    $region5: #{reverse.1} parent=1 // loop_body
      %s11 = ssub.s32 %s6, 1
      %s12 = ssub.s32 %s6, 2
      %s22 = sadd.s32 1, %s15
      %p23 = scmp.ge.s32.totalorder %s22, 2
      %s24 = scalar_select %p23, 0, %s22
      %s25 = sadd.s32 1, %s14
      %s26 = scalar_select %p23, %s25, %s14
      %p27 = scmp.ge.s32.totalorder %s26, 1
      %s28 = scalar_select %p27, 0, %s26
      %s29 = sadd.s32 1, %s13
      %s30 = scalar_select %p27, %s29, %s13
      %p31 = scmp.ge.s32.totalorder %s30, 1
      %s32 = scalar_select %p31, 0, %s30
      %p33 = scmp.le.s32.totalorder 1, %s6
      %p34 = scmp.lt.s32.totalorder %s6, 3
      %p35 = pnand %p33, %p34
      %p36 = pneg %p35
      // Predicated region
      $region9: #{reverse.1} parent=5 // pred_check
        _
      $region10: #{reverse.1} parent=5 // pred_check_branch
        %38 = sbr.rel (%p35) target = $region12
      $region11: #{reverse.1} parent=5 // pred_region
        %s39 = ssub.s32 %s6, 1
      $region12: #{reverse.1} parent=5 // pred_fallthru
        _
      %p40 = scmp.lt.s32.totalorder %s6, 2
      // Predicated region
      $region13: #{reverse.1} parent=5 // pred_check
        %p41 = pneg %p40
      $region14: #{reverse.1} parent=5 // pred_check_branch
        %43 = sbr.rel (%p41) target = $region16
      $region15: #{reverse.1} parent=5 // pred_region
        %s44 = sand.u32 %s6, 1
        %s45 = sand.u32 %s6, 1
        %s46 = smul.addr %s45, 2
        %s47 = scalar_lea.vmem [#allocation1], %s46
        %s48 = ssub.s32 1, %s15
        %s49 = smul.u32 2, %s13
        %s50 = smul.addr %s14, 2
        %s51 = sadd.s32 %s48, %s50
        %s52 = smul.addr %s49, 2
        %s53 = sadd.s32 %s51, %s52
        %s54 = scalar_lea.vmem %s0, %s53
        // Predicated region
        $region17: #{reverse.1} parent=15 // pred_check
          _
        $region18: #{reverse.1} parent=15 // pred_check_branch
          %56 = sbr.rel (0) target = $region20
        $region19: #{reverse.1} parent=15 // pred_region
          // Predicated region
          $region21: #{reverse.1} parent=19 // pred_check
            _
          $region22: #{reverse.1} parent=19 // pred_check_branch
            %58 = sbr.rel target = $region24
          $region23: #{reverse.1} parent=19 // pred_region
            // Predicated region
            $region36: #{reverse.1} parent=23 // pred_check
              _
            $region37: #{reverse.1} parent=23 // pred_check_branch
              %76 = sbr.rel (0) target = $region39
            $region38: #{reverse.1} parent=23 // pred_region
              %s78 = ssub.s32 2, 1
              loop: start=0, step=1, limit=1
              $region40: #{reverse.1} parent=38 // loop_pre_header
                _
              $region41: #{reverse.1} parent=38 // loop_header
                %s80 = sphi 0, %s84
                %p81 = scmp.ge.s32.totalorder %s80, 1
                %s85 = sphi %s54, %s54
                %s86 = sphi %s47, %s47
              $region42: #{reverse.1} parent=38 // loop_header_branch
                %83 = sbr.rel (%p81) target = $region46
              $region43: #{reverse.1} parent=38 // loop_body
                %v87 = vld [vmem:[%s85] sm:%s78]
                %88 = vst [vmem:[%s86] sm:%s78] %v87
                %v89 = vld [vmem:[%s85 + $0x2] sm:%s78]
                %90 = vst [vmem:[%s86 + $0x1] sm:%s78] %v89
              $region44: #{reverse.1} parent=38 // loop_footer
                %s84 = sadd.s32 1, %s80
              $region45: #{reverse.1} parent=38 // loop_footer_branch
                %79 = sbr.rel target = $region41
              $region46: #{reverse.1} parent=38 // loop_exit
                _
            $region39: #{reverse.1} parent=23 // pred_fallthru
              _
          $region24: #{reverse.1} parent=19 // pred_fallthru
            _
          // Predicated region
          $region25: #{reverse.1} parent=19 // pred_check
            _
          $region26: #{reverse.1} parent=19 // pred_check_branch
            %60 = sbr.rel (0) target = $region28
          $region27: #{reverse.1} parent=19 // pred_region
            %s62 = ssub.s32 2, 1
            loop: start=0, step=1, limit=1
            $region29: #{reverse.1} parent=27 // loop_pre_header
              _
            $region30: #{reverse.1} parent=27 // loop_header
              %s64 = sphi 0, %s68
              %p65 = scmp.ge.s32.totalorder %s64, 1
              %s69 = sphi %s54, %s54
              %s70 = sphi %s47, %s47
            $region31: #{reverse.1} parent=27 // loop_header_branch
              %67 = sbr.rel (%p65) target = $region35
            $region32: #{reverse.1} parent=27 // loop_body
              %v71 = vld [vmem:[%s69] sm:%s62]
              %72 = vst [vmem:[%s70] sm:%s62] %v71
              %v73 = vld [vmem:[%s69 + $0x2] sm:%s62]
              %74 = vst [vmem:[%s70 + $0x1] sm:%s62] %v73
            $region33: #{reverse.1} parent=27 // loop_footer
              %s68 = sadd.s32 1, %s64
            $region34: #{reverse.1} parent=27 // loop_footer_branch
              %63 = sbr.rel target = $region30
            $region35: #{reverse.1} parent=27 // loop_exit
              _
          $region28: #{reverse.1} parent=19 // pred_fallthru
            _
        $region20: #{reverse.1} parent=15 // pred_fallthru
          _
        %91 = vnop
      $region16: #{reverse.1} parent=5 // pred_fallthru
        _
      %p92 = scmp.le.s32.totalorder 1, %s6
      %p93 = scmp.lt.s32.totalorder %s6, 3
      %p94 = pnand %p92, %p93
      %p95 = pneg %p94
      // Predicated region
      $region47: #{reverse.1} parent=5 // pred_check
        _
      $region48: #{reverse.1} parent=5 // pred_check_branch
        %97 = sbr.rel (%p94) target = $region50
      $region49: #{reverse.1} parent=5 // pred_region
        %s98 = ssub.s32 %s6, 1
        %s99 = sand.u32 %s11, 1
        %s100 = sand.u32 %s11, 1
        %s101 = smul.addr %s100, 2
        %s102 = scalar_lea.vmem [#allocation1], %s101
        %s103 = sand.u32 %s11, 1
        %s104 = sand.u32 %s11, 1
        %s105 = smul.addr %s104, 2
        %s106 = scalar_lea.vmem [#allocation1], %s105
        %s107 = sand.u32 %s11, 1
        %s108 = sand.u32 %s11, 1
        %s109 = smul.addr %s108, 2
        %s110 = scalar_lea.vmem [#allocation3], %s109
        %s112 = smul.u32 1, 2
        %s113 = sshll.u32 1, %s112
        %s114 = ssub.s32 %s113, 1
        %s115 = scalar_lea.vmem %s106, 1 [#allocation1]
        %s116 = sshrl.u32 %s114, 1
        %s117 = sor.u32 %s114, %s116
        %s118 = sand.u32 %s117, 85
        %s119 = sshrl.u32 %s118, 1
        %s120 = sor.u32 %s118, %s119
        %s121 = sand.u32 51, %s120
        %s122 = sshrl.u32 %s121, 2
        %s123 = sor.u32 %s121, %s122
        %s124 = sand.u32 15, %s123
        %v125 = vld [vmem:[%s115] sm:%s124]
        %v126 = vunpack.c.l.bf16 %v125
        %v127 = vunpack.c.h.bf16 %v125
        %s128 = scalar_lea.vmem [#allocation0], 8
        %129 = vst [vmem:[%s128] sm:%s114] %v126
        %s130 = sshrl.u32 %s114, 1
        %s131 = sor.u32 %s114, %s130
        %s132 = sand.u32 %s131, 85
        %s133 = sshrl.u32 %s132, 1
        %s134 = sor.u32 %s132, %s133
        %s135 = sand.u32 51, %s134
        %s136 = sshrl.u32 %s135, 2
        %s137 = sor.u32 %s135, %s136
        %s138 = sand.u32 15, %s137
        %v139 = vld [vmem:[%s106] sm:%s138]
        %v140 = vunpack.c.l.bf16 %v139
        %v141 = vunpack.c.h.bf16 %v139
        %142 = vst [vmem:[#allocation0] sm:%s114] %v140
        %s143 = ssub.s32 1, %s18
        %s144 = smul.u32 2, %s16
        %s145 = smul.u32 2, %s16
        %v146 = vld [vmem:[#allocation0] sm:$0xff]
        %147 = vperm.xlu0 %4, %v146
        %v148 = vpop.permute.xlu0 %147
        %149 = vst [vmem:[#allocation2] sm:$0xff] %v148
        %s150 = scalar_lea.vmem [#allocation2], 8
        %s151 = scalar_lea.vmem [#allocation0], 8
        %v152 = vld [vmem:[%s151] sm:$0xff]
        %153 = vperm.xlu0 %4, %v152
        %v154 = vpop.permute.xlu0 %153
        %155 = vst [vmem:[%s150] sm:$0xff] %v154
        %s157 = smul.u32 1, 2
        %s158 = sshll.u32 1, %s157
        %s159 = ssub.s32 %s158, 1
        %s160 = sshrl.u32 %s157, 1
        %v161 = vld [vmem:[#allocation2] sm:%s159]
        %v162 = vpack.c.bf16 0.0, %v161
        %s163 = sshll.u32 1, %s160
        %s164 = ssub.s32 %s163, 1
        %165 = vst [vmem:[%s110] sm:%s164] %v162
        %s166 = scalar_lea.vmem [#allocation2], 8
        %v167 = vld [vmem:[%s166] sm:%s159]
        %v168 = vpack.c.bf16 0.0, %v167
        %s169 = sshll.u32 1, %s160
        %s170 = ssub.s32 %s169, 1
        %s171 = scalar_lea.vmem %s110, 1 [#allocation3]
        %172 = vst [vmem:[%s171] sm:%s170] %v168
        %s173 = sand.u32 %s11, 1
        %s174 = sand.u32 %s11, 1
        %s175 = smul.addr %s174, 2
        %s176 = scalar_lea.vmem [#allocation3], %s175
        %s177 = smul.u32 2, %s16
        %s178 = smul.addr %s17, 2
        %s179 = sadd.s32 %s18, %s178
        %s180 = smul.addr %s177, 2
        %s181 = sadd.s32 %s179, %s180
        %s182 = scalar_lea.vmem %s1, %s181
        // Predicated region
        $region51: #{reverse.1} parent=49 // pred_check
          _
        $region52: #{reverse.1} parent=49 // pred_check_branch
          %184 = sbr.rel (0) target = $region54
        $region53: #{reverse.1} parent=49 // pred_region
          // Predicated region
          $region55: #{reverse.1} parent=53 // pred_check
            _
          $region56: #{reverse.1} parent=53 // pred_check_branch
            %186 = sbr.rel target = $region58
          $region57: #{reverse.1} parent=53 // pred_region
            // Predicated region
            $region70: #{reverse.1} parent=57 // pred_check
              _
            $region71: #{reverse.1} parent=57 // pred_check_branch
              %204 = sbr.rel (0) target = $region73
            $region72: #{reverse.1} parent=57 // pred_region
              %s206 = ssub.s32 2, 1
              loop: start=0, step=1, limit=1
              $region74: #{reverse.1} parent=72 // loop_pre_header
                _
              $region75: #{reverse.1} parent=72 // loop_header
                %s208 = sphi 0, %s212
                %p209 = scmp.ge.s32.totalorder %s208, 1
                %s213 = sphi %s176, %s176
                %s214 = sphi %s182, %s182
              $region76: #{reverse.1} parent=72 // loop_header_branch
                %211 = sbr.rel (%p209) target = $region80
              $region77: #{reverse.1} parent=72 // loop_body
                %v215 = vld [vmem:[%s213] sm:%s206]
                %216 = vst [vmem:[%s214] sm:%s206] %v215
                %v217 = vld [vmem:[%s213 + $0x1] sm:%s206]
                %218 = vst [vmem:[%s214 + $0x2] sm:%s206] %v217
              $region78: #{reverse.1} parent=72 // loop_footer
                %s212 = sadd.s32 1, %s208
              $region79: #{reverse.1} parent=72 // loop_footer_branch
                %207 = sbr.rel target = $region75
              $region80: #{reverse.1} parent=72 // loop_exit
                _
            $region73: #{reverse.1} parent=57 // pred_fallthru
              _
          $region58: #{reverse.1} parent=53 // pred_fallthru
            _
          // Predicated region
          $region59: #{reverse.1} parent=53 // pred_check
            _
          $region60: #{reverse.1} parent=53 // pred_check_branch
            %188 = sbr.rel (0) target = $region62
          $region61: #{reverse.1} parent=53 // pred_region
            %s190 = ssub.s32 2, 1
            loop: start=0, step=1, limit=1
            $region63: #{reverse.1} parent=61 // loop_pre_header
              _
            $region64: #{reverse.1} parent=61 // loop_header
              %s192 = sphi 0, %s196
              %p193 = scmp.ge.s32.totalorder %s192, 1
              %s197 = sphi %s176, %s176
              %s198 = sphi %s182, %s182
            $region65: #{reverse.1} parent=61 // loop_header_branch
              %195 = sbr.rel (%p193) target = $region69
            $region66: #{reverse.1} parent=61 // loop_body
              %v199 = vld [vmem:[%s197] sm:%s190]
              %200 = vst [vmem:[%s198] sm:%s190] %v199
              %v201 = vld [vmem:[%s197 + $0x1] sm:%s190]
              %202 = vst [vmem:[%s198 + $0x2] sm:%s190] %v201
            $region67: #{reverse.1} parent=61 // loop_footer
              %s196 = sadd.s32 1, %s192
            $region68: #{reverse.1} parent=61 // loop_footer_branch
              %191 = sbr.rel target = $region64
            $region69: #{reverse.1} parent=61 // loop_exit
              _
          $region62: #{reverse.1} parent=53 // pred_fallthru
            _
        $region54: #{reverse.1} parent=49 // pred_fallthru
          _
        %219 = vnop
      $region50: #{reverse.1} parent=5 // pred_fallthru
        _
      %p220 = scmp.le.s32.totalorder 2, %s6
      // Predicated region
      $region81: #{reverse.1} parent=5 // pred_check
        %p221 = pneg %p220
      $region82: #{reverse.1} parent=5 // pred_check_branch
        %223 = sbr.rel (%p221) target = $region84
      $region83: #{reverse.1} parent=5 // pred_region
        %s224 = ssub.s32 %s6, 2
        %s225 = sand.u32 %s12, 1
        %s226 = sand.u32 %s12, 1
        %s227 = smul.addr %s226, 2
        %s228 = scalar_lea.vmem [#allocation3], %s227
      $region84: #{reverse.1} parent=5 // pred_fallthru
        _
    $region6: #{reverse.1} parent=1 // loop_footer
      %s10 = sadd.s32 1, %s6
    $region7: #{reverse.1} parent=1 // loop_footer_branch
      %5 = sbr.rel target = $region3
    $region8: #{reverse.1} parent=1 // loop_exit
      _

// kernel: stft_layer_forward.1
$region0: #{stft_layer_forward.1}
  #allocation0 [shape = 'u32[]', space=smem, size = 0x4, offset = 0x4, fixed_abs, tag = 'smem constant byte address 0x4 - core index']
  #allocation1 [shape = 'u32[144,128]{1,0:T(1,128)}', space=vmem, size = 0x12000, scoped, tag = 'internal scratch']
  %s0 = inlined_call_operand.vmem [shape: bf16[4,256,512], index: 0, kind: input, shape index: {}]
  %s1 = inlined_call_operand.vmem [shape: bf16[512,512], index: 1, kind: input, shape index: {}]
  %s2 = inlined_call_operand.vmem [shape: f32[4,256,256], index: 2, kind: output, shape index: {}]
  %s3 = sld [smem:[#allocation0]]
  $region41: #{stft_layer_forward.1} parent=0
    _
  %s5 = ssub.s32 1, %s3
  %s6 = scalar_select 0, %s5, %s3
  loop: start=0, step=1, limit=6
  $region2: #{stft_layer_forward.1} parent=0 // loop_pre_header
    _
  $region3: #{stft_layer_forward.1} parent=0 // loop_header
    %s8 = sphi 0, %s12
    %p9 = scmp.ge.s32.totalorder %s8, 6
    %s15 = sphi 0, %s27
    %s16 = sphi 0, %s23
    %s17 = sphi 0, %s15
    %s18 = sphi 0, %s16
    %s19 = sphi 0, %s17
    %s20 = sphi 0, %s18
    %s32 = sphi 0, %s34
    %s35 = sphi 0, %s32
    %s36 = sphi 0, %s35
    %s52 = sphi 0, %s36
    %s56 = sphi 0, %s56
    %s58 = sphi 0, %s56
    %s59 = sphi 0, %s58
    %s73 = sphi 0, %s59
    %s81 = sphi 0, %s83
    %s84 = sphi 0, %s81
    %s85 = sphi 0, %s84
    %s101 = sphi 0, %s85
  $region4: #{stft_layer_forward.1} parent=0 // loop_header_branch
    %11 = sbr.rel (%p9) target = $region8
  $region5: #{stft_layer_forward.1} parent=0 // loop_body
    %s13 = ssub.s32 %s8, 1
    %s14 = ssub.s32 %s8, 2
    %s21 = sadd.s32 1, %s16
    %p22 = scmp.ge.s32.totalorder %s21, 1
    %s23 = scalar_select %p22, 0, %s21
    %s24 = sadd.s32 1, %s15
    %s25 = scalar_select %p22, %s24, %s15
    %p26 = scmp.ge.s32.totalorder %s25, 4
    %s27 = scalar_select %p26, 0, %s25
    %s28 = ssub.s32 %s15, %s27
    %s29 = ssub.s32 %s16, %s23
    %s30 = sor.u32 %s28, %s29
    %p31 = scmp.eq.s32.totalorder %s30, 0
    %s33 = sadd.s32 %s32, 1
    %s34 = scalar_select %p31, %s32, %s33
    %p37 = pneg %p31
    %p38 = scmp.eq.s32.totalorder %s8, 3
    %p39 = por %p37, %p38
    %p40 = scmp.ne.s32.totalorder %s32, %s35
    %p41 = scmp.eq.s32.totalorder %s8, 0
    %p42 = por %p40, %p41
    %p43 = scmp.ne.s32.totalorder %s32, %s35
    %p44 = scmp.eq.s32.totalorder %s13, 3
    %p45 = por %p43, %p44
    %p46 = scmp.ne.s32.totalorder %s35, %s36
    %p47 = scmp.eq.s32.totalorder %s13, 0
    %p48 = por %p46, %p47
    %p49 = scmp.ne.s32.totalorder %s35, %s36
    %p50 = scmp.eq.s32.totalorder %s14, 3
    %p51 = por %p49, %p50
    %p53 = scmp.ne.s32.totalorder %s36, %s52
    %p54 = scmp.eq.s32.totalorder %s14, 0
    %p55 = por %p53, %p54
    %s57 = sadd.s32 %s56, 1
    %p60 = scmp.eq.s32.totalorder %s8, 3
    %p61 = scmp.ne.s32.totalorder %s56, %s58
    %p62 = scmp.eq.s32.totalorder %s8, 0
    %p63 = por %p61, %p62
    %p64 = scmp.ne.s32.totalorder %s56, %s58
    %p65 = scmp.eq.s32.totalorder %s13, 3
    %p66 = por %p64, %p65
    %p67 = scmp.ne.s32.totalorder %s58, %s59
    %p68 = scmp.eq.s32.totalorder %s13, 0
    %p69 = por %p67, %p68
    %p70 = scmp.ne.s32.totalorder %s58, %s59
    %p71 = scmp.eq.s32.totalorder %s14, 3
    %p72 = por %p70, %p71
    %p74 = scmp.ne.s32.totalorder %s59, %s73
    %p75 = scmp.eq.s32.totalorder %s14, 0
    %p76 = por %p74, %p75
    %s77 = ssub.s32 %s15, %s27
    %s78 = ssub.s32 %s16, %s23
    %s79 = sor.u32 %s77, %s78
    %p80 = scmp.eq.s32.totalorder %s79, 0
    %s82 = sadd.s32 %s81, 1
    %s83 = scalar_select %p80, %s81, %s82
    %p86 = pneg %p80
    %p87 = scmp.eq.s32.totalorder %s8, 3
    %p88 = por %p86, %p87
    %p89 = scmp.ne.s32.totalorder %s81, %s84
    %p90 = scmp.eq.s32.totalorder %s8, 0
    %p91 = por %p89, %p90
    %p92 = scmp.ne.s32.totalorder %s81, %s84
    %p93 = scmp.eq.s32.totalorder %s13, 3
    %p94 = por %p92, %p93
    %p95 = scmp.ne.s32.totalorder %s84, %s85
    %p96 = scmp.eq.s32.totalorder %s13, 0
    %p97 = por %p95, %p96
    %p98 = scmp.ne.s32.totalorder %s84, %s85
    %p99 = scmp.eq.s32.totalorder %s14, 3
    %p100 = por %p98, %p99
    %p102 = scmp.ne.s32.totalorder %s85, %s101
    %p103 = scmp.eq.s32.totalorder %s14, 0
    %p104 = por %p102, %p103
    %p105 = scmp.le.s32.totalorder 1, %s8
    %p106 = scmp.lt.s32.totalorder %s8, 5
    %p107 = pnand %p105, %p106
    %p108 = pneg %p107
    // Predicated region
    $region9: #{stft_layer_forward.1} parent=5 // pred_check
      _
    $region10: #{stft_layer_forward.1} parent=5 // pred_check_branch
      %110 = sbr.rel (%p107) target = $region12
    $region11: #{stft_layer_forward.1} parent=5 // pred_region
      %s111 = ssub.s32 %s8, 1
      // Predicated region
      $region13: #{stft_layer_forward.1} parent=11 // pred_check
        %p112 = pneg %p69
      $region14: #{stft_layer_forward.1} parent=11 // pred_check_branch
        %114 = sbr.rel (%p112) target = $region16
      $region15: #{stft_layer_forward.1} parent=11 // pred_region
        _
      $region16: #{stft_layer_forward.1} parent=11 // pred_fallthru
        _
    $region12: #{stft_layer_forward.1} parent=5 // pred_fallthru
      _
    %p115 = scmp.lt.s32.totalorder %s8, 4
    // Predicated region
    $region17: #{stft_layer_forward.1} parent=5 // pred_check
      %p116 = pneg %p115
    $region18: #{stft_layer_forward.1} parent=5 // pred_check_branch
      %118 = sbr.rel (%p116) target = $region20
    $region19: #{stft_layer_forward.1} parent=5 // pred_region
      // Predicated region
      $region21: #{stft_layer_forward.1} parent=19 // pred_check
        %p119 = pneg %p42
      $region22: #{stft_layer_forward.1} parent=19 // pred_check_branch
        %121 = sbr.rel (%p119) target = $region24
      $region23: #{stft_layer_forward.1} parent=19 // pred_region
        %s122 = smul.u32 32, %s16
        %p123 = scmp.lt.s32.totalorder %s15, 3
        %s124 = scalar_select %p123, %s15, 3
        %p125 = scmp.lt.s32.totalorder %s122, 31
        %s126 = scalar_select %p125, %s122, 31
        %s127 = smul.addr %s126, 4
        %s128 = smul.addr %s124, 128
        %s129 = sadd.s32 %s127, %s128
        %s130 = smul.addr %s129, 4
        %s131 = scalar_lea.vmem %s0, %s130
        %s132 = smul.u32 32, %s16
      $region24: #{stft_layer_forward.1} parent=19 // pred_fallthru
        _
    $region20: #{stft_layer_forward.1} parent=5 // pred_fallthru
      _
    %p133 = scmp.le.s32.totalorder 1, %s8
    %p134 = scmp.lt.s32.totalorder %s8, 5
    %p135 = pnand %p133, %p134
    %p136 = pneg %p135
    // Predicated region
    $region25: #{stft_layer_forward.1} parent=5 // pred_check
      _
    $region26: #{stft_layer_forward.1} parent=5 // pred_check_branch
      %138 = sbr.rel (%p135) target = $region28
    $region27: #{stft_layer_forward.1} parent=5 // pred_region
      %s139 = ssub.s32 %s8, 1
      %s140 = smul.u32 32, %s18
      %p141 = scmp.lt.s32.totalorder %s17, 3
      %s142 = scalar_select %p141, %s17, 3
      %p143 = scmp.lt.s32.totalorder %s140, 31
      %s144 = scalar_select %p143, %s140, 31
      %s145 = smul.addr %s144, 4
      %s146 = smul.addr %s142, 128
      %s147 = sadd.s32 %s145, %s146
      %s148 = smul.addr %s147, 4
      %s149 = scalar_lea.vmem %s0, %s148
      %p150 = pneg %p48
      %p151 = pneg %p45
      %p152 = pneg %p69
      %p153 = pneg %p66
      %p154 = pneg %p97
      %p155 = pneg %p94
      %s156 = smul.u32 2, %s18
      %p157 = scmp.lt.s32.totalorder %s17, 3
      %s158 = scalar_select %p157, %s17, 3
      %p159 = scmp.lt.s32.totalorder %s156, 1
      %s160 = scalar_select %p159, %s156, 1
      %s161 = smul.addr %s158, 64
      %s162 = sadd.s32 %s160, %s161
      %s163 = smul.addr %s162, 8
      %s164 = scalar_lea.vmem %s2, %s163
      %s165 = smul.u32 32, %s18
      %p166 = scmp.lt.s32.totalorder %s17, 3
      %s167 = scalar_select %p166, %s17, 3
      %p168 = scmp.lt.s32.totalorder %s165, 31
      %s169 = scalar_select %p168, %s165, 31
      %s170 = smul.addr %s169, 4
      %s171 = smul.addr %s167, 128
      %s172 = sadd.s32 %s170, %s171
      %s173 = smul.addr %s172, 4
      %s174 = scalar_lea.vmem %s0, %s173
      %s175 = smul.u32 32, %s18
      %s176 = smul.u32 2, %s18
      %p177 = scmp.lt.s32.totalorder %s17, 3
      %s178 = scalar_select %p177, %s17, 3
      %p179 = scmp.lt.s32.totalorder %s176, 1
      %s180 = scalar_select %p179, %s176, 1
      %s181 = smul.addr %s178, 64
      %s182 = sadd.s32 %s180, %s181
      %s183 = smul.addr %s182, 8
      %s184 = scalar_lea.vmem %s2, %s183
      %s185 = smul.u32 2, %s18
      %v186 = vld [vmem:[%s174] sm:$0xff]
      %v187 = vld [vmem:[%s174 + $0x8] sm:$0xff]
      %v188 = vld [vmem:[%s174 + $0x10] sm:$0xff]
      %v189 = vld [vmem:[%s174 + $0x18] sm:$0xff]
      %v190 = vld [vmem:[%s174 + $0x20] sm:$0xff]
      %v191 = vld [vmem:[%s174 + $0x28] sm:$0xff]
      %v192 = vld [vmem:[%s174 + $0x30] sm:$0xff]
      %v193 = vld [vmem:[%s174 + $0x38] sm:$0xff]
      %v194 = vld [vmem:[%s174 + $0x40] sm:$0xff]
      %v195 = vld [vmem:[%s174 + $0x48] sm:$0xff]
      %v196 = vld [vmem:[%s174 + $0x50] sm:$0xff]
      %v197 = vld [vmem:[%s174 + $0x58] sm:$0xff]
      %v198 = vld [vmem:[%s174 + $0x60] sm:$0xff]
      %v199 = vld [vmem:[%s174 + $0x68] sm:$0xff]
      %v200 = vld [vmem:[%s174 + $0x70] sm:$0xff]
      %v201 = vld [vmem:[%s174 + $0x78] sm:$0xff]
      %v202 = vld [vmem:[%s174 + $0x80] sm:$0xff]
      %v203 = vld [vmem:[%s174 + $0x88] sm:$0xff]
      %v204 = vld [vmem:[%s174 + $0x90] sm:$0xff]
      %v205 = vld [vmem:[%s174 + $0x98] sm:$0xff]
      %v206 = vld [vmem:[%s174 + $0xa0] sm:$0xff]
      %v207 = vld [vmem:[%s174 + $0xa8] sm:$0xff]
      %v208 = vld [vmem:[%s174 + $0xb0] sm:$0xff]
      %v209 = vld [vmem:[%s174 + $0xb8] sm:$0xff]
      %v210 = vld [vmem:[%s174 + $0xc0] sm:$0xff]
      %v211 = vld [vmem:[%s174 + $0xc8] sm:$0xff]
      %v212 = vld [vmem:[%s174 + $0xd0] sm:$0xff]
      %v213 = vld [vmem:[%s174 + $0xd8] sm:$0xff]
      %v214 = vld [vmem:[%s174 + $0xe0] sm:$0xff]
      %v215 = vld [vmem:[%s174 + $0xe8] sm:$0xff]
      %v216 = vld [vmem:[%s174 + $0xf0] sm:$0xff]
      %v217 = vld [vmem:[%s174 + $0xf8] sm:$0xff]
      %v218 = vld [vmem:[%s174 + $0x100] sm:$0xff]
      %v219 = vld [vmem:[%s174 + $0x108] sm:$0xff]
      %v220 = vld [vmem:[%s174 + $0x110] sm:$0xff]
      %v221 = vld [vmem:[%s174 + $0x118] sm:$0xff]
      %v222 = vld [vmem:[%s174 + $0x120] sm:$0xff]
      %v223 = vld [vmem:[%s174 + $0x128] sm:$0xff]
      %v224 = vld [vmem:[%s174 + $0x130] sm:$0xff]
      %v225 = vld [vmem:[%s174 + $0x138] sm:$0xff]
      %v226 = vld [vmem:[%s174 + $0x140] sm:$0xff]
      %v227 = vld [vmem:[%s174 + $0x148] sm:$0xff]
      %v228 = vld [vmem:[%s174 + $0x150] sm:$0xff]
      %v229 = vld [vmem:[%s174 + $0x158] sm:$0xff]
      %v230 = vld [vmem:[%s174 + $0x160] sm:$0xff]
      %v231 = vld [vmem:[%s174 + $0x168] sm:$0xff]
      %v232 = vld [vmem:[%s174 + $0x170] sm:$0xff]
      %v233 = vld [vmem:[%s174 + $0x178] sm:$0xff]
      %v234 = vld [vmem:[%s174 + $0x180] sm:$0xff]
      %v235 = vld [vmem:[%s174 + $0x188] sm:$0xff]
      %v236 = vld [vmem:[%s174 + $0x190] sm:$0xff]
      %v237 = vld [vmem:[%s174 + $0x198] sm:$0xff]
      %v238 = vld [vmem:[%s174 + $0x1a0] sm:$0xff]
      %v239 = vld [vmem:[%s174 + $0x1a8] sm:$0xff]
      %v240 = vld [vmem:[%s174 + $0x1b0] sm:$0xff]
      %v241 = vld [vmem:[%s174 + $0x1b8] sm:$0xff]
      %v242 = vld [vmem:[%s174 + $0x1c0] sm:$0xff]
      %v243 = vld [vmem:[%s174 + $0x1c8] sm:$0xff]
      %v244 = vld [vmem:[%s174 + $0x1d0] sm:$0xff]
      %v245 = vld [vmem:[%s174 + $0x1d8] sm:$0xff]
      %v246 = vld [vmem:[%s174 + $0x1e0] sm:$0xff]
      %v247 = vld [vmem:[%s174 + $0x1e8] sm:$0xff]
      %v248 = vld [vmem:[%s174 + $0x1f0] sm:$0xff]
      %v249 = vld [vmem:[%s174 + $0x1f8] sm:$0xff]
      %v250 = vld [vmem:[%s1] sm:$0xff]
      %v251 = vld [vmem:[%s1 + $0x8] sm:$0xff]
      %v252 = vld [vmem:[%s1 + $0x10] sm:$0xff]
      %v253 = vld [vmem:[%s1 + $0x18] sm:$0xff]
      %v254 = vld [vmem:[%s1 + $0x20] sm:$0xff]
      %v255 = vld [vmem:[%s1 + $0x28] sm:$0xff]
      %v256 = vld [vmem:[%s1 + $0x30] sm:$0xff]
      %v257 = vld [vmem:[%s1 + $0x38] sm:$0xff]
      %v258 = vld [vmem:[%s1 + $0x40] sm:$0xff]
      %v259 = vld [vmem:[%s1 + $0x48] sm:$0xff]
      %v260 = vld [vmem:[%s1 + $0x50] sm:$0xff]
      %v261 = vld [vmem:[%s1 + $0x58] sm:$0xff]
      %v262 = vld [vmem:[%s1 + $0x60] sm:$0xff]
      %v263 = vld [vmem:[%s1 + $0x68] sm:$0xff]
      %v264 = vld [vmem:[%s1 + $0x70] sm:$0xff]
      %v265 = vld [vmem:[%s1 + $0x78] sm:$0xff]
      %v266 = vld [vmem:[%s1 + $0x80] sm:$0xff]
      %v267 = vld [vmem:[%s1 + $0x88] sm:$0xff]
      %v268 = vld [vmem:[%s1 + $0x90] sm:$0xff]
      %v269 = vld [vmem:[%s1 + $0x98] sm:$0xff]
      %v270 = vld [vmem:[%s1 + $0xa0] sm:$0xff]
      %v271 = vld [vmem:[%s1 + $0xa8] sm:$0xff]
      %v272 = vld [vmem:[%s1 + $0xb0] sm:$0xff]
      %v273 = vld [vmem:[%s1 + $0xb8] sm:$0xff]
      %v274 = vld [vmem:[%s1 + $0xc0] sm:$0xff]
      %v275 = vld [vmem:[%s1 + $0xc8] sm:$0xff]
      %v276 = vld [vmem:[%s1 + $0xd0] sm:$0xff]
      %v277 = vld [vmem:[%s1 + $0xd8] sm:$0xff]
      %v278 = vld [vmem:[%s1 + $0xe0] sm:$0xff]
      %v279 = vld [vmem:[%s1 + $0xe8] sm:$0xff]
      %v280 = vld [vmem:[%s1 + $0xf0] sm:$0xff]
      %v281 = vld [vmem:[%s1 + $0xf8] sm:$0xff]
      %v282 = vld [vmem:[%s1 + $0x100] sm:$0xff]
      %v283 = vld [vmem:[%s1 + $0x108] sm:$0xff]
      %v284 = vld [vmem:[%s1 + $0x110] sm:$0xff]
      %v285 = vld [vmem:[%s1 + $0x118] sm:$0xff]
      %v286 = vld [vmem:[%s1 + $0x120] sm:$0xff]
      %v287 = vld [vmem:[%s1 + $0x128] sm:$0xff]
      %v288 = vld [vmem:[%s1 + $0x130] sm:$0xff]
      %v289 = vld [vmem:[%s1 + $0x138] sm:$0xff]
      %v290 = vld [vmem:[%s1 + $0x140] sm:$0xff]
      %v291 = vld [vmem:[%s1 + $0x148] sm:$0xff]
      %v292 = vld [vmem:[%s1 + $0x150] sm:$0xff]
      %v293 = vld [vmem:[%s1 + $0x158] sm:$0xff]
      %v294 = vld [vmem:[%s1 + $0x160] sm:$0xff]
      %v295 = vld [vmem:[%s1 + $0x168] sm:$0xff]
      %v296 = vld [vmem:[%s1 + $0x170] sm:$0xff]
      %v297 = vld [vmem:[%s1 + $0x178] sm:$0xff]
      %v298 = vld [vmem:[%s1 + $0x180] sm:$0xff]
      %v299 = vld [vmem:[%s1 + $0x188] sm:$0xff]
      %v300 = vld [vmem:[%s1 + $0x190] sm:$0xff]
      %v301 = vld [vmem:[%s1 + $0x198] sm:$0xff]
      %v302 = vld [vmem:[%s1 + $0x1a0] sm:$0xff]
      %v303 = vld [vmem:[%s1 + $0x1a8] sm:$0xff]
      %v304 = vld [vmem:[%s1 + $0x1b0] sm:$0xff]
      %v305 = vld [vmem:[%s1 + $0x1b8] sm:$0xff]
      %v306 = vld [vmem:[%s1 + $0x1c0] sm:$0xff]
      %v307 = vld [vmem:[%s1 + $0x1c8] sm:$0xff]
      %v308 = vld [vmem:[%s1 + $0x1d0] sm:$0xff]
      %v309 = vld [vmem:[%s1 + $0x1d8] sm:$0xff]
      %v310 = vld [vmem:[%s1 + $0x1e0] sm:$0xff]
      %v311 = vld [vmem:[%s1 + $0x1e8] sm:$0xff]
      %v312 = vld [vmem:[%s1 + $0x1f0] sm:$0xff]
      %v313 = vld [vmem:[%s1 + $0x1f8] sm:$0xff]
      %v314 = vld [vmem:[%s1 + $0x200] sm:$0xff]
      %v315 = vld [vmem:[%s1 + $0x208] sm:$0xff]
      %v316 = vld [vmem:[%s1 + $0x210] sm:$0xff]
      %v317 = vld [vmem:[%s1 + $0x218] sm:$0xff]
      %v318 = vld [vmem:[%s1 + $0x220] sm:$0xff]
      %v319 = vld [vmem:[%s1 + $0x228] sm:$0xff]
      %v320 = vld [vmem:[%s1 + $0x230] sm:$0xff]
      %v321 = vld [vmem:[%s1 + $0x238] sm:$0xff]
      %v322 = vld [vmem:[%s1 + $0x240] sm:$0xff]
      %v323 = vld [vmem:[%s1 + $0x248] sm:$0xff]
      %v324 = vld [vmem:[%s1 + $0x250] sm:$0xff]
      %v325 = vld [vmem:[%s1 + $0x258] sm:$0xff]
      %v326 = vld [vmem:[%s1 + $0x260] sm:$0xff]
      %v327 = vld [vmem:[%s1 + $0x268] sm:$0xff]
      %v328 = vld [vmem:[%s1 + $0x270] sm:$0xff]
      %v329 = vld [vmem:[%s1 + $0x278] sm:$0xff]
      %v330 = vld [vmem:[%s1 + $0x280] sm:$0xff]
      %v331 = vld [vmem:[%s1 + $0x288] sm:$0xff]
      %v332 = vld [vmem:[%s1 + $0x290] sm:$0xff]
      %v333 = vld [vmem:[%s1 + $0x298] sm:$0xff]
      %v334 = vld [vmem:[%s1 + $0x2a0] sm:$0xff]
      %v335 = vld [vmem:[%s1 + $0x2a8] sm:$0xff]
      %v336 = vld [vmem:[%s1 + $0x2b0] sm:$0xff]
      %v337 = vld [vmem:[%s1 + $0x2b8] sm:$0xff]
      %v338 = vld [vmem:[%s1 + $0x2c0] sm:$0xff]
      %v339 = vld [vmem:[%s1 + $0x2c8] sm:$0xff]
      %v340 = vld [vmem:[%s1 + $0x2d0] sm:$0xff]
      %v341 = vld [vmem:[%s1 + $0x2d8] sm:$0xff]
      %v342 = vld [vmem:[%s1 + $0x2e0] sm:$0xff]
      %v343 = vld [vmem:[%s1 + $0x2e8] sm:$0xff]
      %v344 = vld [vmem:[%s1 + $0x2f0] sm:$0xff]
      %v345 = vld [vmem:[%s1 + $0x2f8] sm:$0xff]
      %v346 = vld [vmem:[%s1 + $0x300] sm:$0xff]
      %v347 = vld [vmem:[%s1 + $0x308] sm:$0xff]
      %v348 = vld [vmem:[%s1 + $0x310] sm:$0xff]
      %v349 = vld [vmem:[%s1 + $0x318] sm:$0xff]
      %v350 = vld [vmem:[%s1 + $0x320] sm:$0xff]
      %v351 = vld [vmem:[%s1 + $0x328] sm:$0xff]
      %v352 = vld [vmem:[%s1 + $0x330] sm:$0xff]
      %v353 = vld [vmem:[%s1 + $0x338] sm:$0xff]
      %v354 = vld [vmem:[%s1 + $0x340] sm:$0xff]
      %v355 = vld [vmem:[%s1 + $0x348] sm:$0xff]
      %v356 = vld [vmem:[%s1 + $0x350] sm:$0xff]
      %v357 = vld [vmem:[%s1 + $0x358] sm:$0xff]
      %v358 = vld [vmem:[%s1 + $0x360] sm:$0xff]
      %v359 = vld [vmem:[%s1 + $0x368] sm:$0xff]
      %v360 = vld [vmem:[%s1 + $0x370] sm:$0xff]
      %v361 = vld [vmem:[%s1 + $0x378] sm:$0xff]
      %v362 = vld [vmem:[%s1 + $0x380] sm:$0xff]
      %v363 = vld [vmem:[%s1 + $0x388] sm:$0xff]
      %v364 = vld [vmem:[%s1 + $0x390] sm:$0xff]
      %v365 = vld [vmem:[%s1 + $0x398] sm:$0xff]
      %v366 = vld [vmem:[%s1 + $0x3a0] sm:$0xff]
      %v367 = vld [vmem:[%s1 + $0x3a8] sm:$0xff]
      %v368 = vld [vmem:[%s1 + $0x3b0] sm:$0xff]
      %v369 = vld [vmem:[%s1 + $0x3b8] sm:$0xff]
      %v370 = vld [vmem:[%s1 + $0x3c0] sm:$0xff]
      %v371 = vld [vmem:[%s1 + $0x3c8] sm:$0xff]
      %v372 = vld [vmem:[%s1 + $0x3d0] sm:$0xff]
      %v373 = vld [vmem:[%s1 + $0x3d8] sm:$0xff]
      %v374 = vld [vmem:[%s1 + $0x3e0] sm:$0xff]
      %v375 = vld [vmem:[%s1 + $0x3e8] sm:$0xff]
      %v376 = vld [vmem:[%s1 + $0x3f0] sm:$0xff]
      %v377 = vld [vmem:[%s1 + $0x3f8] sm:$0xff]
      %v442 = vunpack.c.l.b16 %v186
      %v443 = vunpack.c.h.b16 %v186
      %v444 = vunpack.c.l.b16 %v187
      %v445 = vunpack.c.h.b16 %v187
      %v446 = vunpack.c.l.b16 %v188
      %v447 = vunpack.c.h.b16 %v188
      %v448 = vunpack.c.l.b16 %v189
      %v449 = vunpack.c.h.b16 %v189
      %v450 = vunpack.c.l.b16 %v190
      %v451 = vunpack.c.h.b16 %v190
      %v452 = vunpack.c.l.b16 %v191
      %v453 = vunpack.c.h.b16 %v191
      %v454 = vunpack.c.l.b16 %v192
      %v455 = vunpack.c.h.b16 %v192
      %v456 = vunpack.c.l.b16 %v193
      %v457 = vunpack.c.h.b16 %v193
      %v458 = vunpack.c.l.b16 %v194
      %v459 = vunpack.c.h.b16 %v194
      %v460 = vunpack.c.l.b16 %v195
      %v461 = vunpack.c.h.b16 %v195
      %v462 = vunpack.c.l.b16 %v196
      %v463 = vunpack.c.h.b16 %v196
      %v464 = vunpack.c.l.b16 %v197
      %v465 = vunpack.c.h.b16 %v197
      %v466 = vunpack.c.l.b16 %v198
      %v467 = vunpack.c.h.b16 %v198
      %v468 = vunpack.c.l.b16 %v199
      %v469 = vunpack.c.h.b16 %v199
      %v470 = vunpack.c.l.b16 %v200
      %v471 = vunpack.c.h.b16 %v200
      %v472 = vunpack.c.l.b16 %v201
      %v473 = vunpack.c.h.b16 %v201
      %v474 = vunpack.c.l.b16 %v202
      %v475 = vunpack.c.h.b16 %v202
      %v476 = vunpack.c.l.b16 %v203
      %v477 = vunpack.c.h.b16 %v203
      %v478 = vunpack.c.l.b16 %v204
      %v479 = vunpack.c.h.b16 %v204
      %v480 = vunpack.c.l.b16 %v205
      %v481 = vunpack.c.h.b16 %v205
      %v482 = vunpack.c.l.b16 %v206
      %v483 = vunpack.c.h.b16 %v206
      %v484 = vunpack.c.l.b16 %v207
      %v485 = vunpack.c.h.b16 %v207
      %v486 = vunpack.c.l.b16 %v208
      %v487 = vunpack.c.h.b16 %v208
      %v488 = vunpack.c.l.b16 %v209
      %v489 = vunpack.c.h.b16 %v209
      %v490 = vunpack.c.l.b16 %v210
      %v491 = vunpack.c.h.b16 %v210
      %v492 = vunpack.c.l.b16 %v211
      %v493 = vunpack.c.h.b16 %v211
      %v494 = vunpack.c.l.b16 %v212
      %v495 = vunpack.c.h.b16 %v212
      %v496 = vunpack.c.l.b16 %v213
      %v497 = vunpack.c.h.b16 %v213
      %v498 = vunpack.c.l.b16 %v214
      %v499 = vunpack.c.h.b16 %v214
      %v500 = vunpack.c.l.b16 %v215
      %v501 = vunpack.c.h.b16 %v215
      %v502 = vunpack.c.l.b16 %v216
      %v503 = vunpack.c.h.b16 %v216
      %v504 = vunpack.c.l.b16 %v217
      %v505 = vunpack.c.h.b16 %v217
      %v506 = vunpack.c.l.b16 %v218
      %v507 = vunpack.c.h.b16 %v218
      %v508 = vunpack.c.l.b16 %v219
      %v509 = vunpack.c.h.b16 %v219
      %v510 = vunpack.c.l.b16 %v220
      %v511 = vunpack.c.h.b16 %v220
      %v512 = vunpack.c.l.b16 %v221
      %v513 = vunpack.c.h.b16 %v221
      %v514 = vunpack.c.l.b16 %v222
      %v515 = vunpack.c.h.b16 %v222
      %v516 = vunpack.c.l.b16 %v223
      %v517 = vunpack.c.h.b16 %v223
      %v518 = vunpack.c.l.b16 %v224
      %v519 = vunpack.c.h.b16 %v224
      %v520 = vunpack.c.l.b16 %v225
      %v521 = vunpack.c.h.b16 %v225
      %v522 = vunpack.c.l.b16 %v226
      %v523 = vunpack.c.h.b16 %v226
      %v524 = vunpack.c.l.b16 %v227
      %v525 = vunpack.c.h.b16 %v227
      %v526 = vunpack.c.l.b16 %v228
      %v527 = vunpack.c.h.b16 %v228
      %v528 = vunpack.c.l.b16 %v229
      %v529 = vunpack.c.h.b16 %v229
      %v530 = vunpack.c.l.b16 %v230
      %v531 = vunpack.c.h.b16 %v230
      %v532 = vunpack.c.l.b16 %v231
      %v533 = vunpack.c.h.b16 %v231
      %v534 = vunpack.c.l.b16 %v232
      %v535 = vunpack.c.h.b16 %v232
      %v536 = vunpack.c.l.b16 %v233
      %v537 = vunpack.c.h.b16 %v233
      %v538 = vunpack.c.l.b16 %v234
      %v539 = vunpack.c.h.b16 %v234
      %v540 = vunpack.c.l.b16 %v235
      %v541 = vunpack.c.h.b16 %v235
      %v542 = vunpack.c.l.b16 %v236
      %v543 = vunpack.c.h.b16 %v236
      %v544 = vunpack.c.l.b16 %v237
      %v545 = vunpack.c.h.b16 %v237
      %v546 = vunpack.c.l.b16 %v238
      %v547 = vunpack.c.h.b16 %v238
      %v548 = vunpack.c.l.b16 %v239
      %v549 = vunpack.c.h.b16 %v239
      %v550 = vunpack.c.l.b16 %v240
      %v551 = vunpack.c.h.b16 %v240
      %v552 = vunpack.c.l.b16 %v241
      %v553 = vunpack.c.h.b16 %v241
      %v554 = vunpack.c.l.b16 %v242
      %v555 = vunpack.c.h.b16 %v242
      %v556 = vunpack.c.l.b16 %v243
      %v557 = vunpack.c.h.b16 %v243
      %v558 = vunpack.c.l.b16 %v244
      %v559 = vunpack.c.h.b16 %v244
      %v560 = vunpack.c.l.b16 %v245
      %v561 = vunpack.c.h.b16 %v245
      %v562 = vunpack.c.l.b16 %v246
      %v563 = vunpack.c.h.b16 %v246
      %v564 = vunpack.c.l.b16 %v247
      %v565 = vunpack.c.h.b16 %v247
      %v566 = vunpack.c.l.b16 %v248
      %v567 = vunpack.c.h.b16 %v248
      %v568 = vunpack.c.l.b16 %v249
      %v569 = vunpack.c.h.b16 %v249
      %v570 = vpack.c.b16 %v446, %v442
      %v571 = vpack.c.b16 %v447, %v443
      %v572 = vpack.c.b16 %v448, %v444
      %v573 = vpack.c.b16 %v449, %v445
      %v574 = vpack.c.b16 %v454, %v450
      %v575 = vpack.c.b16 %v455, %v451
      %v576 = vpack.c.b16 %v456, %v452
      %v577 = vpack.c.b16 %v457, %v453
      %v578 = vpack.c.b16 %v462, %v458
      %v579 = vpack.c.b16 %v463, %v459
      %v580 = vpack.c.b16 %v464, %v460
      %v581 = vpack.c.b16 %v465, %v461
      %v582 = vpack.c.b16 %v470, %v466
      %v583 = vpack.c.b16 %v471, %v467
      %v584 = vpack.c.b16 %v472, %v468
      %v585 = vpack.c.b16 %v473, %v469
      %v586 = vpack.c.b16 %v478, %v474
      %v587 = vpack.c.b16 %v479, %v475
      %v588 = vpack.c.b16 %v480, %v476
      %v589 = vpack.c.b16 %v481, %v477
      %v590 = vpack.c.b16 %v486, %v482
      %v591 = vpack.c.b16 %v487, %v483
      %v592 = vpack.c.b16 %v488, %v484
      %v593 = vpack.c.b16 %v489, %v485
      %v594 = vpack.c.b16 %v494, %v490
      %v595 = vpack.c.b16 %v495, %v491
      %v596 = vpack.c.b16 %v496, %v492
      %v597 = vpack.c.b16 %v497, %v493
      %v598 = vpack.c.b16 %v502, %v498
      %v599 = vpack.c.b16 %v503, %v499
      %v600 = vpack.c.b16 %v504, %v500
      %v601 = vpack.c.b16 %v505, %v501
      %v602 = vpack.c.b16 %v510, %v506
      %v603 = vpack.c.b16 %v511, %v507
      %v604 = vpack.c.b16 %v512, %v508
      %v605 = vpack.c.b16 %v513, %v509
      %v606 = vpack.c.b16 %v518, %v514
      %v607 = vpack.c.b16 %v519, %v515
      %v608 = vpack.c.b16 %v520, %v516
      %v609 = vpack.c.b16 %v521, %v517
      %v610 = vpack.c.b16 %v526, %v522
      %v611 = vpack.c.b16 %v527, %v523
      %v612 = vpack.c.b16 %v528, %v524
      %v613 = vpack.c.b16 %v529, %v525
      %v614 = vpack.c.b16 %v534, %v530
      %v615 = vpack.c.b16 %v535, %v531
      %v616 = vpack.c.b16 %v536, %v532
      %v617 = vpack.c.b16 %v537, %v533
      %v618 = vpack.c.b16 %v542, %v538
      %v619 = vpack.c.b16 %v543, %v539
      %v620 = vpack.c.b16 %v544, %v540
      %v621 = vpack.c.b16 %v545, %v541
      %v622 = vpack.c.b16 %v550, %v546
      %v623 = vpack.c.b16 %v551, %v547
      %v624 = vpack.c.b16 %v552, %v548
      %v625 = vpack.c.b16 %v553, %v549
      %v626 = vpack.c.b16 %v558, %v554
      %v627 = vpack.c.b16 %v559, %v555
      %v628 = vpack.c.b16 %v560, %v556
      %v629 = vpack.c.b16 %v561, %v557
      %v630 = vpack.c.b16 %v566, %v562
      %v631 = vpack.c.b16 %v567, %v563
      %v632 = vpack.c.b16 %v568, %v564
      %v633 = vpack.c.b16 %v569, %v565
      %v826 = vunpack.c.l.b16 %v250
      %v827 = vunpack.c.h.b16 %v250
      %v828 = vunpack.c.l.b16 %v251
      %v829 = vunpack.c.h.b16 %v251
      %v830 = vunpack.c.l.b16 %v252
      %v831 = vunpack.c.h.b16 %v252
      %v832 = vunpack.c.l.b16 %v253
      %v833 = vunpack.c.h.b16 %v253
      %v834 = vunpack.c.l.b16 %v254
      %v835 = vunpack.c.h.b16 %v254
      %v836 = vunpack.c.l.b16 %v255
      %v837 = vunpack.c.h.b16 %v255
      %v838 = vunpack.c.l.b16 %v256
      %v839 = vunpack.c.h.b16 %v256
      %v840 = vunpack.c.l.b16 %v257
      %v841 = vunpack.c.h.b16 %v257
      %v842 = vunpack.c.l.b16 %v258
      %v843 = vunpack.c.h.b16 %v258
      %v844 = vunpack.c.l.b16 %v259
      %v845 = vunpack.c.h.b16 %v259
      %v846 = vunpack.c.l.b16 %v260
      %v847 = vunpack.c.h.b16 %v260
      %v848 = vunpack.c.l.b16 %v261
      %v849 = vunpack.c.h.b16 %v261
      %v850 = vunpack.c.l.b16 %v262
      %v851 = vunpack.c.h.b16 %v262
      %v852 = vunpack.c.l.b16 %v263
      %v853 = vunpack.c.h.b16 %v263
      %v854 = vunpack.c.l.b16 %v264
      %v855 = vunpack.c.h.b16 %v264
      %v856 = vunpack.c.l.b16 %v265
      %v857 = vunpack.c.h.b16 %v265
      %v858 = vunpack.c.l.b16 %v266
      %v859 = vunpack.c.h.b16 %v266
      %v860 = vunpack.c.l.b16 %v267
      %v861 = vunpack.c.h.b16 %v267
      %v862 = vunpack.c.l.b16 %v268
      %v863 = vunpack.c.h.b16 %v268
      %v864 = vunpack.c.l.b16 %v269
      %v865 = vunpack.c.h.b16 %v269
      %v866 = vunpack.c.l.b16 %v270
      %v867 = vunpack.c.h.b16 %v270
      %v868 = vunpack.c.l.b16 %v271
      %v869 = vunpack.c.h.b16 %v271
      %v870 = vunpack.c.l.b16 %v272
      %v871 = vunpack.c.h.b16 %v272
      %v872 = vunpack.c.l.b16 %v273
      %v873 = vunpack.c.h.b16 %v273
      %v874 = vunpack.c.l.b16 %v274
      %v875 = vunpack.c.h.b16 %v274
      %v876 = vunpack.c.l.b16 %v275
      %v877 = vunpack.c.h.b16 %v275
      %v878 = vunpack.c.l.b16 %v276
      %v879 = vunpack.c.h.b16 %v276
      %v880 = vunpack.c.l.b16 %v277
      %v881 = vunpack.c.h.b16 %v277
      %v882 = vunpack.c.l.b16 %v278
      %v883 = vunpack.c.h.b16 %v278
      %v884 = vunpack.c.l.b16 %v279
      %v885 = vunpack.c.h.b16 %v279
      %v886 = vunpack.c.l.b16 %v280
      %v887 = vunpack.c.h.b16 %v280
      %v888 = vunpack.c.l.b16 %v281
      %v889 = vunpack.c.h.b16 %v281
      %v890 = vunpack.c.l.b16 %v282
      %v891 = vunpack.c.h.b16 %v282
      %v892 = vunpack.c.l.b16 %v283
      %v893 = vunpack.c.h.b16 %v283
      %v894 = vunpack.c.l.b16 %v284
      %v895 = vunpack.c.h.b16 %v284
      %v896 = vunpack.c.l.b16 %v285
      %v897 = vunpack.c.h.b16 %v285
      %v898 = vunpack.c.l.b16 %v286
      %v899 = vunpack.c.h.b16 %v286
      %v900 = vunpack.c.l.b16 %v287
      %v901 = vunpack.c.h.b16 %v287
      %v902 = vunpack.c.l.b16 %v288
      %v903 = vunpack.c.h.b16 %v288
      %v904 = vunpack.c.l.b16 %v289
      %v905 = vunpack.c.h.b16 %v289
      %v906 = vunpack.c.l.b16 %v290
      %v907 = vunpack.c.h.b16 %v290
      %v908 = vunpack.c.l.b16 %v291
      %v909 = vunpack.c.h.b16 %v291
      %v910 = vunpack.c.l.b16 %v292
      %v911 = vunpack.c.h.b16 %v292
      %v912 = vunpack.c.l.b16 %v293
      %v913 = vunpack.c.h.b16 %v293
      %v914 = vunpack.c.l.b16 %v294
      %v915 = vunpack.c.h.b16 %v294
      %v916 = vunpack.c.l.b16 %v295
      %v917 = vunpack.c.h.b16 %v295
      %v918 = vunpack.c.l.b16 %v296
      %v919 = vunpack.c.h.b16 %v296
      %v920 = vunpack.c.l.b16 %v297
      %v921 = vunpack.c.h.b16 %v297
      %v922 = vunpack.c.l.b16 %v298
      %v923 = vunpack.c.h.b16 %v298
      %v924 = vunpack.c.l.b16 %v299
      %v925 = vunpack.c.h.b16 %v299
      %v926 = vunpack.c.l.b16 %v300
      %v927 = vunpack.c.h.b16 %v300
      %v928 = vunpack.c.l.b16 %v301
      %v929 = vunpack.c.h.b16 %v301
      %v930 = vunpack.c.l.b16 %v302
      %v931 = vunpack.c.h.b16 %v302
      %v932 = vunpack.c.l.b16 %v303
      %v933 = vunpack.c.h.b16 %v303
      %v934 = vunpack.c.l.b16 %v304
      %v935 = vunpack.c.h.b16 %v304
      %v936 = vunpack.c.l.b16 %v305
      %v937 = vunpack.c.h.b16 %v305
      %v938 = vunpack.c.l.b16 %v306
      %v939 = vunpack.c.h.b16 %v306
      %v940 = vunpack.c.l.b16 %v307
      %v941 = vunpack.c.h.b16 %v307
      %v942 = vunpack.c.l.b16 %v308
      %v943 = vunpack.c.h.b16 %v308
      %v944 = vunpack.c.l.b16 %v309
      %v945 = vunpack.c.h.b16 %v309
      %v946 = vunpack.c.l.b16 %v310
      %v947 = vunpack.c.h.b16 %v310
      %v948 = vunpack.c.l.b16 %v311
      %v949 = vunpack.c.h.b16 %v311
      %v950 = vunpack.c.l.b16 %v312
      %v951 = vunpack.c.h.b16 %v312
      %v952 = vunpack.c.l.b16 %v313
      %v953 = vunpack.c.h.b16 %v313
      %v954 = vunpack.c.l.b16 %v314
      %v955 = vunpack.c.h.b16 %v314
      %v956 = vunpack.c.l.b16 %v315
      %v957 = vunpack.c.h.b16 %v315
      %v958 = vunpack.c.l.b16 %v316
      %v959 = vunpack.c.h.b16 %v316
      %v960 = vunpack.c.l.b16 %v317
      %v961 = vunpack.c.h.b16 %v317
      %v962 = vunpack.c.l.b16 %v318
      %v963 = vunpack.c.h.b16 %v318
      %v964 = vunpack.c.l.b16 %v319
      %v965 = vunpack.c.h.b16 %v319
      %v966 = vunpack.c.l.b16 %v320
      %v967 = vunpack.c.h.b16 %v320
      %v968 = vunpack.c.l.b16 %v321
      %v969 = vunpack.c.h.b16 %v321
      %v970 = vunpack.c.l.b16 %v322
      %v971 = vunpack.c.h.b16 %v322
      %v972 = vunpack.c.l.b16 %v323
      %v973 = vunpack.c.h.b16 %v323
      %v974 = vunpack.c.l.b16 %v324
      %v975 = vunpack.c.h.b16 %v324
      %v976 = vunpack.c.l.b16 %v325
      %v977 = vunpack.c.h.b16 %v325
      %v978 = vunpack.c.l.b16 %v326
      %v979 = vunpack.c.h.b16 %v326
      %v980 = vunpack.c.l.b16 %v327
      %v981 = vunpack.c.h.b16 %v327
      %v982 = vunpack.c.l.b16 %v328
      %v983 = vunpack.c.h.b16 %v328
      %v984 = vunpack.c.l.b16 %v329
      %v985 = vunpack.c.h.b16 %v329
      %v986 = vunpack.c.l.b16 %v330
      %v987 = vunpack.c.h.b16 %v330
      %v988 = vunpack.c.l.b16 %v331
      %v989 = vunpack.c.h.b16 %v331
      %v990 = vunpack.c.l.b16 %v332
      %v991 = vunpack.c.h.b16 %v332
      %v992 = vunpack.c.l.b16 %v333
      %v993 = vunpack.c.h.b16 %v333
      %v994 = vunpack.c.l.b16 %v334
      %v995 = vunpack.c.h.b16 %v334
      %v996 = vunpack.c.l.b16 %v335
      %v997 = vunpack.c.h.b16 %v335
      %v998 = vunpack.c.l.b16 %v336
      %v999 = vunpack.c.h.b16 %v336
      %v1000 = vunpack.c.l.b16 %v337
      %v1001 = vunpack.c.h.b16 %v337
      %v1002 = vunpack.c.l.b16 %v338
      %v1003 = vunpack.c.h.b16 %v338
      %v1004 = vunpack.c.l.b16 %v339
      %v1005 = vunpack.c.h.b16 %v339
      %v1006 = vunpack.c.l.b16 %v340
      %v1007 = vunpack.c.h.b16 %v340
      %v1008 = vunpack.c.l.b16 %v341
      %v1009 = vunpack.c.h.b16 %v341
      %v1010 = vunpack.c.l.b16 %v342
      %v1011 = vunpack.c.h.b16 %v342
      %v1012 = vunpack.c.l.b16 %v343
      %v1013 = vunpack.c.h.b16 %v343
      %v1014 = vunpack.c.l.b16 %v344
      %v1015 = vunpack.c.h.b16 %v344
      %v1016 = vunpack.c.l.b16 %v345
      %v1017 = vunpack.c.h.b16 %v345
      %v1018 = vunpack.c.l.b16 %v346
      %v1019 = vunpack.c.h.b16 %v346
      %v1020 = vunpack.c.l.b16 %v347
      %v1021 = vunpack.c.h.b16 %v347
      %v1022 = vunpack.c.l.b16 %v348
      %v1023 = vunpack.c.h.b16 %v348
      %v1024 = vunpack.c.l.b16 %v349
      %v1025 = vunpack.c.h.b16 %v349
      %v1026 = vunpack.c.l.b16 %v350
      %v1027 = vunpack.c.h.b16 %v350
      %v1028 = vunpack.c.l.b16 %v351
      %v1029 = vunpack.c.h.b16 %v351
      %v1030 = vunpack.c.l.b16 %v352
      %v1031 = vunpack.c.h.b16 %v352
      %v1032 = vunpack.c.l.b16 %v353
      %v1033 = vunpack.c.h.b16 %v353
      %v1034 = vunpack.c.l.b16 %v354
      %v1035 = vunpack.c.h.b16 %v354
      %v1036 = vunpack.c.l.b16 %v355
      %v1037 = vunpack.c.h.b16 %v355
      %v1038 = vunpack.c.l.b16 %v356
      %v1039 = vunpack.c.h.b16 %v356
      %v1040 = vunpack.c.l.b16 %v357
      %v1041 = vunpack.c.h.b16 %v357
      %v1042 = vunpack.c.l.b16 %v358
      %v1043 = vunpack.c.h.b16 %v358
      %v1044 = vunpack.c.l.b16 %v359
      %v1045 = vunpack.c.h.b16 %v359
      %v1046 = vunpack.c.l.b16 %v360
      %v1047 = vunpack.c.h.b16 %v360
      %v1048 = vunpack.c.l.b16 %v361
      %v1049 = vunpack.c.h.b16 %v361
      %v1050 = vunpack.c.l.b16 %v362
      %v1051 = vunpack.c.h.b16 %v362
      %v1052 = vunpack.c.l.b16 %v363
      %v1053 = vunpack.c.h.b16 %v363
      %v1054 = vunpack.c.l.b16 %v364
      %v1055 = vunpack.c.h.b16 %v364
      %v1056 = vunpack.c.l.b16 %v365
      %v1057 = vunpack.c.h.b16 %v365
      %v1058 = vunpack.c.l.b16 %v366
      %v1059 = vunpack.c.h.b16 %v366
      %v1060 = vunpack.c.l.b16 %v367
      %v1061 = vunpack.c.h.b16 %v367
      %v1062 = vunpack.c.l.b16 %v368
      %v1063 = vunpack.c.h.b16 %v368
      %v1064 = vunpack.c.l.b16 %v369
      %v1065 = vunpack.c.h.b16 %v369
      %v1066 = vunpack.c.l.b16 %v370
      %v1067 = vunpack.c.h.b16 %v370
      %v1068 = vunpack.c.l.b16 %v371
      %v1069 = vunpack.c.h.b16 %v371
      %v1070 = vunpack.c.l.b16 %v372
      %v1071 = vunpack.c.h.b16 %v372
      %v1072 = vunpack.c.l.b16 %v373
      %v1073 = vunpack.c.h.b16 %v373
      %v1074 = vunpack.c.l.b16 %v374
      %v1075 = vunpack.c.h.b16 %v374
      %v1076 = vunpack.c.l.b16 %v375
      %v1077 = vunpack.c.h.b16 %v375
      %v1078 = vunpack.c.l.b16 %v376
      %v1079 = vunpack.c.h.b16 %v376
      %v1080 = vunpack.c.l.b16 %v377
      %v1081 = vunpack.c.h.b16 %v377
      %v1082 = vpack.c.b16 %v830, %v826
      %v1083 = vpack.c.b16 %v831, %v827
      %v1084 = vpack.c.b16 %v832, %v828
      %v1085 = vpack.c.b16 %v833, %v829
      %v1086 = vpack.c.b16 %v838, %v834
      %v1087 = vpack.c.b16 %v839, %v835
      %v1088 = vpack.c.b16 %v840, %v836
      %v1089 = vpack.c.b16 %v841, %v837
      %v1090 = vpack.c.b16 %v846, %v842
      %v1091 = vpack.c.b16 %v847, %v843
      %v1092 = vpack.c.b16 %v848, %v844
      %v1093 = vpack.c.b16 %v849, %v845
      %v1094 = vpack.c.b16 %v854, %v850
      %v1095 = vpack.c.b16 %v855, %v851
      %v1096 = vpack.c.b16 %v856, %v852
      %v1097 = vpack.c.b16 %v857, %v853
      %v1098 = vpack.c.b16 %v862, %v858
      %v1099 = vpack.c.b16 %v863, %v859
      %v1100 = vpack.c.b16 %v864, %v860
      %v1101 = vpack.c.b16 %v865, %v861
      %v1102 = vpack.c.b16 %v870, %v866
      %v1103 = vpack.c.b16 %v871, %v867
      %v1104 = vpack.c.b16 %v872, %v868
      %v1105 = vpack.c.b16 %v873, %v869
      %v1106 = vpack.c.b16 %v878, %v874
      %v1107 = vpack.c.b16 %v879, %v875
      %v1108 = vpack.c.b16 %v880, %v876
      %v1109 = vpack.c.b16 %v881, %v877
      %v1110 = vpack.c.b16 %v886, %v882
      %v1111 = vpack.c.b16 %v887, %v883
      %v1112 = vpack.c.b16 %v888, %v884
      %v1113 = vpack.c.b16 %v889, %v885
      %v1114 = vpack.c.b16 %v894, %v890
      %v1115 = vpack.c.b16 %v895, %v891
      %v1116 = vpack.c.b16 %v896, %v892
      %v1117 = vpack.c.b16 %v897, %v893
      %v1118 = vpack.c.b16 %v902, %v898
      %v1119 = vpack.c.b16 %v903, %v899
      %v1120 = vpack.c.b16 %v904, %v900
      %v1121 = vpack.c.b16 %v905, %v901
      %v1122 = vpack.c.b16 %v910, %v906
      %v1123 = vpack.c.b16 %v911, %v907
      %v1124 = vpack.c.b16 %v912, %v908
      %v1125 = vpack.c.b16 %v913, %v909
      %v1126 = vpack.c.b16 %v918, %v914
      %v1127 = vpack.c.b16 %v919, %v915
      %v1128 = vpack.c.b16 %v920, %v916
      %v1129 = vpack.c.b16 %v921, %v917
      %v1130 = vpack.c.b16 %v926, %v922
      %v1131 = vpack.c.b16 %v927, %v923
      %v1132 = vpack.c.b16 %v928, %v924
      %v1133 = vpack.c.b16 %v929, %v925
      %v1134 = vpack.c.b16 %v934, %v930
      %v1135 = vpack.c.b16 %v935, %v931
      %v1136 = vpack.c.b16 %v936, %v932
      %v1137 = vpack.c.b16 %v937, %v933
      %v1138 = vpack.c.b16 %v942, %v938
      %v1139 = vpack.c.b16 %v943, %v939
      %v1140 = vpack.c.b16 %v944, %v940
      %v1141 = vpack.c.b16 %v945, %v941
      %v1142 = vpack.c.b16 %v950, %v946
      %v1143 = vpack.c.b16 %v951, %v947
      %v1144 = vpack.c.b16 %v952, %v948
      %v1145 = vpack.c.b16 %v953, %v949
      %v1146 = vpack.c.b16 %v958, %v954
      %v1147 = vpack.c.b16 %v959, %v955
      %v1148 = vpack.c.b16 %v960, %v956
      %v1149 = vpack.c.b16 %v961, %v957
      %v1150 = vpack.c.b16 %v966, %v962
      %v1151 = vpack.c.b16 %v967, %v963
      %v1152 = vpack.c.b16 %v968, %v964
      %v1153 = vpack.c.b16 %v969, %v965
      %v1154 = vpack.c.b16 %v974, %v970
      %v1155 = vpack.c.b16 %v975, %v971
      %v1156 = vpack.c.b16 %v976, %v972
      %v1157 = vpack.c.b16 %v977, %v973
      %v1158 = vpack.c.b16 %v982, %v978
      %v1159 = vpack.c.b16 %v983, %v979
      %v1160 = vpack.c.b16 %v984, %v980
      %v1161 = vpack.c.b16 %v985, %v981
      %v1162 = vpack.c.b16 %v990, %v986
      %v1163 = vpack.c.b16 %v991, %v987
      %v1164 = vpack.c.b16 %v992, %v988
      %v1165 = vpack.c.b16 %v993, %v989
      %v1166 = vpack.c.b16 %v998, %v994
      %v1167 = vpack.c.b16 %v999, %v995
      %v1168 = vpack.c.b16 %v1000, %v996
      %v1169 = vpack.c.b16 %v1001, %v997
      %v1170 = vpack.c.b16 %v1006, %v1002
      %v1171 = vpack.c.b16 %v1007, %v1003
      %v1172 = vpack.c.b16 %v1008, %v1004
      %v1173 = vpack.c.b16 %v1009, %v1005
      %v1174 = vpack.c.b16 %v1014, %v1010
      %v1175 = vpack.c.b16 %v1015, %v1011
      %v1176 = vpack.c.b16 %v1016, %v1012
      %v1177 = vpack.c.b16 %v1017, %v1013
      %v1178 = vpack.c.b16 %v1022, %v1018
      %v1179 = vpack.c.b16 %v1023, %v1019
      %v1180 = vpack.c.b16 %v1024, %v1020
      %v1181 = vpack.c.b16 %v1025, %v1021
      %v1182 = vpack.c.b16 %v1030, %v1026
      %v1183 = vpack.c.b16 %v1031, %v1027
      %v1184 = vpack.c.b16 %v1032, %v1028
      %v1185 = vpack.c.b16 %v1033, %v1029
      %v1186 = vpack.c.b16 %v1038, %v1034
      %v1187 = vpack.c.b16 %v1039, %v1035
      %v1188 = vpack.c.b16 %v1040, %v1036
      %v1189 = vpack.c.b16 %v1041, %v1037
      %v1190 = vpack.c.b16 %v1046, %v1042
      %v1191 = vpack.c.b16 %v1047, %v1043
      %v1192 = vpack.c.b16 %v1048, %v1044
      %v1193 = vpack.c.b16 %v1049, %v1045
      %v1194 = vpack.c.b16 %v1054, %v1050
      %v1195 = vpack.c.b16 %v1055, %v1051
      %v1196 = vpack.c.b16 %v1056, %v1052
      %v1197 = vpack.c.b16 %v1057, %v1053
      %v1198 = vpack.c.b16 %v1062, %v1058
      %v1199 = vpack.c.b16 %v1063, %v1059
      %v1200 = vpack.c.b16 %v1064, %v1060
      %v1201 = vpack.c.b16 %v1065, %v1061
      %v1202 = vpack.c.b16 %v1070, %v1066
      %v1203 = vpack.c.b16 %v1071, %v1067
      %v1204 = vpack.c.b16 %v1072, %v1068
      %v1205 = vpack.c.b16 %v1073, %v1069
      %v1206 = vpack.c.b16 %v1078, %v1074
      %v1207 = vpack.c.b16 %v1079, %v1075
      %v1208 = vpack.c.b16 %v1080, %v1076
      %v1209 = vpack.c.b16 %v1081, %v1077
      %1338 = vmatprep.subr.bf16.mxu0 %v1111
      %1339 = vmatpush1.bf16.msra.mxu0 %v1110
      %1340 = vmatprep.subr.bf16.mxu0 %v1107
      %1341 = vmatpush1.bf16.msra.mxu0 %v1106
      %1342 = vmatprep.subr.bf16.mxu0 %v1103
      %1343 = vmatpush1.bf16.msra.mxu0 %v1102
      %1344 = vmatprep.subr.bf16.mxu0 %v1099
      %1345 = vmatpush1.bf16.msra.mxu0 %v1098
      %1346 = vmatprep.subr.bf16.mxu0 %v1095
      %1347 = vmatpush1.bf16.msra.mxu0 %v1094
      %1348 = vmatprep.subr.bf16.mxu0 %v1091
      %1349 = vmatpush1.bf16.msra.mxu0 %v1090
      %1350 = vmatprep.subr.bf16.mxu0 %v1087
      %1351 = vmatpush1.bf16.msra.mxu0 %v1086
      %1352 = vmatprep.subr.bf16.mxu0 %v1083
      %1353 = vmatpush1.bf16.msra.mxu0 %v1082
      %1354 = vmatprep.subr.bf16.mxu0 %v1143
      %1355 = vmatpush2.bf16.msra.mxu0 %v1142
      %1356 = vmatprep.subr.bf16.mxu0 %v1139
      %1357 = vmatpush2.bf16.msra.mxu0 %v1138
      %1358 = vmatprep.subr.bf16.mxu0 %v1135
      %1359 = vmatpush2.bf16.msra.mxu0 %v1134
      %1360 = vmatprep.subr.bf16.mxu0 %v1131
      %1361 = vmatpush2.bf16.msra.mxu0 %v1130
      %1362 = vmatprep.subr.bf16.mxu0 %v1127
      %1363 = vmatpush2.bf16.msra.mxu0 %v1126
      %1364 = vmatprep.subr.bf16.mxu0 %v1123
      %1365 = vmatpush2.bf16.msra.mxu0 %v1122
      %1366 = vmatprep.subr.bf16.mxu0 %v1119
      %1367 = vmatpush2.bf16.msra.mxu0 %v1118
      %1368 = vmatprep.subr.bf16.mxu0 %v1115
      %1369 = vmatpush2.bf16.msra.mxu0 %v1114
      %1370 = vmatprep.mubr.bf16.mxu0 %v571
      %1371 = vmatmul.mubr.bf16.gmra.mxu0 %v570
      %v1372 = vpop.f32.mrf.mxu0
      %v1373 = vadd.f32 0.0, %v1372
      %v1374 = vpop.f32.mrf.mxu0
      %v1375 = vadd.f32 0.0, %v1374
      %v1376 = vpop.f32.mrf.mxu0
      %v1377 = vadd.f32 0.0, %v1376
      %v1378 = vpop.f32.mrf.mxu0
      %v1379 = vadd.f32 0.0, %v1378
      %1380 = vmatprep.mubr.bf16.mxu0 %v575
      %1381 = vmatmul.mubr.bf16.gmra.mxu0 %v574
      %v1382 = vpop.f32.mrf.mxu0
      %v1383 = vadd.f32 0.0, %v1382
      %v1384 = vpop.f32.mrf.mxu0
      %v1385 = vadd.f32 0.0, %v1384
      %v1386 = vpop.f32.mrf.mxu0
      %v1387 = vadd.f32 0.0, %v1386
      %v1388 = vpop.f32.mrf.mxu0
      %v1389 = vadd.f32 0.0, %v1388
      %1390 = vmatprep.mubr.bf16.mxu0 %v579
      %1391 = vmatmul.mubr.bf16.gmra.mxu0 %v578
      %v1392 = vpop.f32.mrf.mxu0
      %v1393 = vadd.f32 0.0, %v1392
      %v1394 = vpop.f32.mrf.mxu0
      %v1395 = vadd.f32 0.0, %v1394
      %v1396 = vpop.f32.mrf.mxu0
      %v1397 = vadd.f32 0.0, %v1396
      %v1398 = vpop.f32.mrf.mxu0
      %v1399 = vadd.f32 0.0, %v1398
      %1400 = vmatprep.mubr.bf16.mxu0 %v583
      %1401 = vmatmul.mubr.bf16.gmra.mxu0 %v582
      %v1402 = vpop.f32.mrf.mxu0
      %v1403 = vadd.f32 0.0, %v1402
      %v1404 = vpop.f32.mrf.mxu0
      %v1405 = vadd.f32 0.0, %v1404
      %v1406 = vpop.f32.mrf.mxu0
      %v1407 = vadd.f32 0.0, %v1406
      %v1408 = vpop.f32.mrf.mxu0
      %v1409 = vadd.f32 0.0, %v1408
      %1410 = vmatprep.mubr.bf16.mxu0 %v587
      %1411 = vmatmul.mubr.bf16.gmra.mxu0 %v586
      %v1412 = vpop.f32.mrf.mxu0
      %v1413 = vadd.f32 0.0, %v1412
      %v1414 = vpop.f32.mrf.mxu0
      %v1415 = vadd.f32 0.0, %v1414
      %v1416 = vpop.f32.mrf.mxu0
      %v1417 = vadd.f32 0.0, %v1416
      %v1418 = vpop.f32.mrf.mxu0
      %v1419 = vadd.f32 0.0, %v1418
      %1420 = vmatprep.mubr.bf16.mxu0 %v591
      %1421 = vmatmul.mubr.bf16.gmra.mxu0 %v590
      %v1422 = vpop.f32.mrf.mxu0
      %v1423 = vadd.f32 0.0, %v1422
      %v1424 = vpop.f32.mrf.mxu0
      %v1425 = vadd.f32 0.0, %v1424
      %v1426 = vpop.f32.mrf.mxu0
      %v1427 = vadd.f32 0.0, %v1426
      %v1428 = vpop.f32.mrf.mxu0
      %v1429 = vadd.f32 0.0, %v1428
      %1430 = vmatprep.mubr.bf16.mxu0 %v595
      %1431 = vmatmul.mubr.bf16.gmra.mxu0 %v594
      %v1432 = vpop.f32.mrf.mxu0
      %v1433 = vadd.f32 0.0, %v1432
      %v1434 = vpop.f32.mrf.mxu0
      %v1435 = vadd.f32 0.0, %v1434
      %v1436 = vpop.f32.mrf.mxu0
      %v1437 = vadd.f32 0.0, %v1436
      %v1438 = vpop.f32.mrf.mxu0
      %v1439 = vadd.f32 0.0, %v1438
      %1440 = vmatprep.mubr.bf16.mxu0 %v599
      %1441 = vmatmul.mubr.bf16.gmra.mxu0 %v598
      %v1442 = vpop.f32.mrf.mxu0
      %v1443 = vadd.f32 0.0, %v1442
      %v1444 = vpop.f32.mrf.mxu0
      %v1445 = vadd.f32 0.0, %v1444
      %v1446 = vpop.f32.mrf.mxu0
      %v1447 = vadd.f32 0.0, %v1446
      %v1448 = vpop.f32.mrf.mxu0
      %v1449 = vadd.f32 0.0, %v1448
      %1450 = vmatprep.mubr.bf16.mxu0 %v603
      %1451 = vmatmul.mubr.bf16.gmra.mxu0 %v602
      %v1452 = vpop.f32.mrf.mxu0
      %v1453 = vadd.f32 0.0, %v1452
      %v1454 = vpop.f32.mrf.mxu0
      %v1455 = vadd.f32 0.0, %v1454
      %v1456 = vpop.f32.mrf.mxu0
      %v1457 = vadd.f32 0.0, %v1456
      %v1458 = vpop.f32.mrf.mxu0
      %v1459 = vadd.f32 0.0, %v1458
      %1460 = vmatprep.mubr.bf16.mxu0 %v607
      %1461 = vmatmul.mubr.bf16.gmra.mxu0 %v606
      %v1462 = vpop.f32.mrf.mxu0
      %v1463 = vadd.f32 0.0, %v1462
      %v1464 = vpop.f32.mrf.mxu0
      %v1465 = vadd.f32 0.0, %v1464
      %v1466 = vpop.f32.mrf.mxu0
      %v1467 = vadd.f32 0.0, %v1466
      %v1468 = vpop.f32.mrf.mxu0
      %v1469 = vadd.f32 0.0, %v1468
      %1470 = vmatprep.mubr.bf16.mxu0 %v611
      %1471 = vmatmul.mubr.bf16.gmra.mxu0 %v610
      %v1472 = vpop.f32.mrf.mxu0
      %v1473 = vadd.f32 0.0, %v1472
      %v1474 = vpop.f32.mrf.mxu0
      %v1475 = vadd.f32 0.0, %v1474
      %v1476 = vpop.f32.mrf.mxu0
      %v1477 = vadd.f32 0.0, %v1476
      %v1478 = vpop.f32.mrf.mxu0
      %v1479 = vadd.f32 0.0, %v1478
      %1480 = vmatprep.mubr.bf16.mxu0 %v615
      %1481 = vmatmul.mubr.bf16.gmra.mxu0 %v614
      %v1482 = vpop.f32.mrf.mxu0
      %v1483 = vadd.f32 0.0, %v1482
      %v1484 = vpop.f32.mrf.mxu0
      %v1485 = vadd.f32 0.0, %v1484
      %v1486 = vpop.f32.mrf.mxu0
      %v1487 = vadd.f32 0.0, %v1486
      %v1488 = vpop.f32.mrf.mxu0
      %v1489 = vadd.f32 0.0, %v1488
      %1490 = vmatprep.mubr.bf16.mxu0 %v619
      %1491 = vmatmul.mubr.bf16.gmra.mxu0 %v618
      %v1492 = vpop.f32.mrf.mxu0
      %v1493 = vadd.f32 0.0, %v1492
      %v1494 = vpop.f32.mrf.mxu0
      %v1495 = vadd.f32 0.0, %v1494
      %v1496 = vpop.f32.mrf.mxu0
      %v1497 = vadd.f32 0.0, %v1496
      %v1498 = vpop.f32.mrf.mxu0
      %v1499 = vadd.f32 0.0, %v1498
      %1500 = vmatprep.mubr.bf16.mxu0 %v623
      %1501 = vmatmul.mubr.bf16.gmra.mxu0 %v622
      %v1502 = vpop.f32.mrf.mxu0
      %v1503 = vadd.f32 0.0, %v1502
      %v1504 = vpop.f32.mrf.mxu0
      %v1505 = vadd.f32 0.0, %v1504
      %v1506 = vpop.f32.mrf.mxu0
      %v1507 = vadd.f32 0.0, %v1506
      %v1508 = vpop.f32.mrf.mxu0
      %v1509 = vadd.f32 0.0, %v1508
      %1510 = vmatprep.mubr.bf16.mxu0 %v627
      %1511 = vmatmul.mubr.bf16.gmra.mxu0 %v626
      %v1512 = vpop.f32.mrf.mxu0
      %v1513 = vadd.f32 0.0, %v1512
      %v1514 = vpop.f32.mrf.mxu0
      %v1515 = vadd.f32 0.0, %v1514
      %v1516 = vpop.f32.mrf.mxu0
      %v1517 = vadd.f32 0.0, %v1516
      %v1518 = vpop.f32.mrf.mxu0
      %v1519 = vadd.f32 0.0, %v1518
      %1520 = vmatprep.mubr.bf16.mxu0 %v631
      %1521 = vmatmul.mubr.bf16.gmra.mxu0 %v630
      %v1522 = vpop.f32.mrf.mxu0
      %v1523 = vadd.f32 0.0, %v1522
      %v1524 = vpop.f32.mrf.mxu0
      %v1525 = vadd.f32 0.0, %v1524
      %v1526 = vpop.f32.mrf.mxu0
      %v1527 = vadd.f32 0.0, %v1526
      %v1528 = vpop.f32.mrf.mxu0
      %v1529 = vadd.f32 0.0, %v1528
      %1530 = vdwg.mxu0
      %1531 = vmatprep.subr.bf16.mxu0 %v1175
      %1532 = vmatpush1.bf16.msra.mxu0 %v1174
      %1533 = vmatprep.subr.bf16.mxu0 %v1171
      %1534 = vmatpush1.bf16.msra.mxu0 %v1170
      %1535 = vmatprep.subr.bf16.mxu0 %v1167
      %1536 = vmatpush1.bf16.msra.mxu0 %v1166
      %1537 = vmatprep.subr.bf16.mxu0 %v1163
      %1538 = vmatpush1.bf16.msra.mxu0 %v1162
      %1539 = vmatprep.subr.bf16.mxu0 %v1159
      %1540 = vmatpush1.bf16.msra.mxu0 %v1158
      %1541 = vmatprep.subr.bf16.mxu0 %v1155
      %1542 = vmatpush1.bf16.msra.mxu0 %v1154
      %1543 = vmatprep.subr.bf16.mxu0 %v1151
      %1544 = vmatpush1.bf16.msra.mxu0 %v1150
      %1545 = vmatprep.subr.bf16.mxu0 %v1147
      %1546 = vmatpush1.bf16.msra.mxu0 %v1146
      %1547 = vmatprep.subr.bf16.mxu0 %v1207
      %1548 = vmatpush2.bf16.msra.mxu0 %v1206
      %1549 = vmatprep.subr.bf16.mxu0 %v1203
      %1550 = vmatpush2.bf16.msra.mxu0 %v1202
      %1551 = vmatprep.subr.bf16.mxu0 %v1199
      %1552 = vmatpush2.bf16.msra.mxu0 %v1198
      %1553 = vmatprep.subr.bf16.mxu0 %v1195
      %1554 = vmatpush2.bf16.msra.mxu0 %v1194
      %1555 = vmatprep.subr.bf16.mxu0 %v1191
      %1556 = vmatpush2.bf16.msra.mxu0 %v1190
      %1557 = vmatprep.subr.bf16.mxu0 %v1187
      %1558 = vmatpush2.bf16.msra.mxu0 %v1186
      %1559 = vmatprep.subr.bf16.mxu0 %v1183
      %1560 = vmatpush2.bf16.msra.mxu0 %v1182
      %1561 = vmatprep.subr.bf16.mxu0 %v1179
      %1562 = vmatpush2.bf16.msra.mxu0 %v1178
      %1563 = vmatprep.mubr.bf16.mxu0 %v573
      %1564 = vmatmul.mubr.bf16.gmra.mxu0 %v572
      %v1565 = vpop.f32.mrf.mxu0
      %v1566 = vadd.f32 %v1373, %v1565
      %v1567 = vpop.f32.mrf.mxu0
      %v1568 = vadd.f32 %v1375, %v1567
      %v1569 = vpop.f32.mrf.mxu0
      %v1570 = vadd.f32 %v1377, %v1569
      %v1571 = vpop.f32.mrf.mxu0
      %v1572 = vadd.f32 %v1379, %v1571
      %1573 = vmatprep.mubr.bf16.mxu0 %v577
      %1574 = vmatmul.mubr.bf16.gmra.mxu0 %v576
      %v1575 = vpop.f32.mrf.mxu0
      %v1576 = vadd.f32 %v1383, %v1575
      %v1577 = vpop.f32.mrf.mxu0
      %v1578 = vadd.f32 %v1385, %v1577
      %v1579 = vpop.f32.mrf.mxu0
      %v1580 = vadd.f32 %v1387, %v1579
      %v1581 = vpop.f32.mrf.mxu0
      %v1582 = vadd.f32 %v1389, %v1581
      %1583 = vmatprep.mubr.bf16.mxu0 %v581
      %1584 = vmatmul.mubr.bf16.gmra.mxu0 %v580
      %v1585 = vpop.f32.mrf.mxu0
      %v1586 = vadd.f32 %v1393, %v1585
      %v1587 = vpop.f32.mrf.mxu0
      %v1588 = vadd.f32 %v1395, %v1587
      %v1589 = vpop.f32.mrf.mxu0
      %v1590 = vadd.f32 %v1397, %v1589
      %v1591 = vpop.f32.mrf.mxu0
      %v1592 = vadd.f32 %v1399, %v1591
      %1593 = vmatprep.mubr.bf16.mxu0 %v585
      %1594 = vmatmul.mubr.bf16.gmra.mxu0 %v584
      %v1595 = vpop.f32.mrf.mxu0
      %v1596 = vadd.f32 %v1403, %v1595
      %v1597 = vpop.f32.mrf.mxu0
      %v1598 = vadd.f32 %v1405, %v1597
      %v1599 = vpop.f32.mrf.mxu0
      %v1600 = vadd.f32 %v1407, %v1599
      %v1601 = vpop.f32.mrf.mxu0
      %v1602 = vadd.f32 %v1409, %v1601
      %1603 = vmatprep.mubr.bf16.mxu0 %v589
      %1604 = vmatmul.mubr.bf16.gmra.mxu0 %v588
      %v1605 = vpop.f32.mrf.mxu0
      %v1606 = vadd.f32 %v1413, %v1605
      %v1607 = vpop.f32.mrf.mxu0
      %v1608 = vadd.f32 %v1415, %v1607
      %v1609 = vpop.f32.mrf.mxu0
      %v1610 = vadd.f32 %v1417, %v1609
      %v1611 = vpop.f32.mrf.mxu0
      %v1612 = vadd.f32 %v1419, %v1611
      %1613 = vmatprep.mubr.bf16.mxu0 %v593
      %1614 = vmatmul.mubr.bf16.gmra.mxu0 %v592
      %v1615 = vpop.f32.mrf.mxu0
      %v1616 = vadd.f32 %v1423, %v1615
      %v1617 = vpop.f32.mrf.mxu0
      %v1618 = vadd.f32 %v1425, %v1617
      %v1619 = vpop.f32.mrf.mxu0
      %v1620 = vadd.f32 %v1427, %v1619
      %v1621 = vpop.f32.mrf.mxu0
      %v1622 = vadd.f32 %v1429, %v1621
      %1623 = vmatprep.mubr.bf16.mxu0 %v597
      %1624 = vmatmul.mubr.bf16.gmra.mxu0 %v596
      %v1625 = vpop.f32.mrf.mxu0
      %v1626 = vadd.f32 %v1433, %v1625
      %v1627 = vpop.f32.mrf.mxu0
      %v1628 = vadd.f32 %v1435, %v1627
      %v1629 = vpop.f32.mrf.mxu0
      %v1630 = vadd.f32 %v1437, %v1629
      %v1631 = vpop.f32.mrf.mxu0
      %v1632 = vadd.f32 %v1439, %v1631
      %1633 = vmatprep.mubr.bf16.mxu0 %v601
      %1634 = vmatmul.mubr.bf16.gmra.mxu0 %v600
      %v1635 = vpop.f32.mrf.mxu0
      %v1636 = vadd.f32 %v1443, %v1635
      %v1637 = vpop.f32.mrf.mxu0
      %v1638 = vadd.f32 %v1445, %v1637
      %v1639 = vpop.f32.mrf.mxu0
      %v1640 = vadd.f32 %v1447, %v1639
      %v1641 = vpop.f32.mrf.mxu0
      %v1642 = vadd.f32 %v1449, %v1641
      %1643 = vmatprep.mubr.bf16.mxu0 %v605
      %1644 = vmatmul.mubr.bf16.gmra.mxu0 %v604
      %v1645 = vpop.f32.mrf.mxu0
      %v1646 = vadd.f32 %v1453, %v1645
      %v1647 = vpop.f32.mrf.mxu0
      %v1648 = vadd.f32 %v1455, %v1647
      %v1649 = vpop.f32.mrf.mxu0
      %v1650 = vadd.f32 %v1457, %v1649
      %v1651 = vpop.f32.mrf.mxu0
      %v1652 = vadd.f32 %v1459, %v1651
      %1653 = vmatprep.mubr.bf16.mxu0 %v609
      %1654 = vmatmul.mubr.bf16.gmra.mxu0 %v608
      %v1655 = vpop.f32.mrf.mxu0
      %v1656 = vadd.f32 %v1463, %v1655
      %v1657 = vpop.f32.mrf.mxu0
      %v1658 = vadd.f32 %v1465, %v1657
      %v1659 = vpop.f32.mrf.mxu0
      %v1660 = vadd.f32 %v1467, %v1659
      %v1661 = vpop.f32.mrf.mxu0
      %v1662 = vadd.f32 %v1469, %v1661
      %1663 = vmatprep.mubr.bf16.mxu0 %v613
      %1664 = vmatmul.mubr.bf16.gmra.mxu0 %v612
      %v1665 = vpop.f32.mrf.mxu0
      %v1666 = vadd.f32 %v1473, %v1665
      %v1667 = vpop.f32.mrf.mxu0
      %v1668 = vadd.f32 %v1475, %v1667
      %v1669 = vpop.f32.mrf.mxu0
      %v1670 = vadd.f32 %v1477, %v1669
      %v1671 = vpop.f32.mrf.mxu0
      %v1672 = vadd.f32 %v1479, %v1671
      %1673 = vmatprep.mubr.bf16.mxu0 %v617
      %1674 = vmatmul.mubr.bf16.gmra.mxu0 %v616
      %v1675 = vpop.f32.mrf.mxu0
      %v1676 = vadd.f32 %v1483, %v1675
      %v1677 = vpop.f32.mrf.mxu0
      %v1678 = vadd.f32 %v1485, %v1677
      %v1679 = vpop.f32.mrf.mxu0
      %v1680 = vadd.f32 %v1487, %v1679
      %v1681 = vpop.f32.mrf.mxu0
      %v1682 = vadd.f32 %v1489, %v1681
      %1683 = vmatprep.mubr.bf16.mxu0 %v621
      %1684 = vmatmul.mubr.bf16.gmra.mxu0 %v620
      %v1685 = vpop.f32.mrf.mxu0
      %v1686 = vadd.f32 %v1493, %v1685
      %v1687 = vpop.f32.mrf.mxu0
      %v1688 = vadd.f32 %v1495, %v1687
      %v1689 = vpop.f32.mrf.mxu0
      %v1690 = vadd.f32 %v1497, %v1689
      %v1691 = vpop.f32.mrf.mxu0
      %v1692 = vadd.f32 %v1499, %v1691
      %1693 = vmatprep.mubr.bf16.mxu0 %v625
      %1694 = vmatmul.mubr.bf16.gmra.mxu0 %v624
      %v1695 = vpop.f32.mrf.mxu0
      %v1696 = vadd.f32 %v1503, %v1695
      %v1697 = vpop.f32.mrf.mxu0
      %v1698 = vadd.f32 %v1505, %v1697
      %v1699 = vpop.f32.mrf.mxu0
      %v1700 = vadd.f32 %v1507, %v1699
      %v1701 = vpop.f32.mrf.mxu0
      %v1702 = vadd.f32 %v1509, %v1701
      %1703 = vmatprep.mubr.bf16.mxu0 %v629
      %1704 = vmatmul.mubr.bf16.gmra.mxu0 %v628
      %v1705 = vpop.f32.mrf.mxu0
      %v1706 = vadd.f32 %v1513, %v1705
      %v1707 = vpop.f32.mrf.mxu0
      %v1708 = vadd.f32 %v1515, %v1707
      %v1709 = vpop.f32.mrf.mxu0
      %v1710 = vadd.f32 %v1517, %v1709
      %v1711 = vpop.f32.mrf.mxu0
      %v1712 = vadd.f32 %v1519, %v1711
      %1713 = vmatprep.mubr.bf16.mxu0 %v633
      %1714 = vmatmul.mubr.bf16.gmra.mxu0 %v632
      %v1715 = vpop.f32.mrf.mxu0
      %v1716 = vadd.f32 %v1523, %v1715
      %v1717 = vpop.f32.mrf.mxu0
      %v1718 = vadd.f32 %v1525, %v1717
      %v1719 = vpop.f32.mrf.mxu0
      %v1720 = vadd.f32 %v1527, %v1719
      %v1721 = vpop.f32.mrf.mxu0
      %v1722 = vadd.f32 %v1529, %v1721
      %1723 = vdwg.mxu0
      %1724 = vmatprep.subr.bf16.mxu0 %v1113
      %1725 = vmatpush1.bf16.msra.mxu0 %v1112
      %1726 = vmatprep.subr.bf16.mxu0 %v1109
      %1727 = vmatpush1.bf16.msra.mxu0 %v1108
      %1728 = vmatprep.subr.bf16.mxu0 %v1105
      %1729 = vmatpush1.bf16.msra.mxu0 %v1104
      %1730 = vmatprep.subr.bf16.mxu0 %v1101
      %1731 = vmatpush1.bf16.msra.mxu0 %v1100
      %1732 = vmatprep.subr.bf16.mxu0 %v1097
      %1733 = vmatpush1.bf16.msra.mxu0 %v1096
      %1734 = vmatprep.subr.bf16.mxu0 %v1093
      %1735 = vmatpush1.bf16.msra.mxu0 %v1092
      %1736 = vmatprep.subr.bf16.mxu0 %v1089
      %1737 = vmatpush1.bf16.msra.mxu0 %v1088
      %1738 = vmatprep.subr.bf16.mxu0 %v1085
      %1739 = vmatpush1.bf16.msra.mxu0 %v1084
      %1740 = vmatprep.subr.bf16.mxu0 %v1145
      %1741 = vmatpush2.bf16.msra.mxu0 %v1144
      %1742 = vmatprep.subr.bf16.mxu0 %v1141
      %1743 = vmatpush2.bf16.msra.mxu0 %v1140
      %1744 = vmatprep.subr.bf16.mxu0 %v1137
      %1745 = vmatpush2.bf16.msra.mxu0 %v1136
      %1746 = vmatprep.subr.bf16.mxu0 %v1133
      %1747 = vmatpush2.bf16.msra.mxu0 %v1132
      %1748 = vmatprep.subr.bf16.mxu0 %v1129
      %1749 = vmatpush2.bf16.msra.mxu0 %v1128
      %1750 = vmatprep.subr.bf16.mxu0 %v1125
      %1751 = vmatpush2.bf16.msra.mxu0 %v1124
      %1752 = vmatprep.subr.bf16.mxu0 %v1121
      %1753 = vmatpush2.bf16.msra.mxu0 %v1120
      %1754 = vmatprep.subr.bf16.mxu0 %v1117
      %1755 = vmatpush2.bf16.msra.mxu0 %v1116
      %1756 = vmatprep.mubr.bf16.mxu0 %v571
      %1757 = vmatmul.mubr.bf16.gmra.mxu0 %v570
      %v1758 = vpop.f32.mrf.mxu0
      %v1759 = vadd.f32 0.0, %v1758
      %v1760 = vpop.f32.mrf.mxu0
      %v1761 = vadd.f32 0.0, %v1760
      %v1762 = vpop.f32.mrf.mxu0
      %v1763 = vadd.f32 0.0, %v1762
      %v1764 = vpop.f32.mrf.mxu0
      %v1765 = vadd.f32 0.0, %v1764
      %1766 = vmatprep.mubr.bf16.mxu0 %v575
      %1767 = vmatmul.mubr.bf16.gmra.mxu0 %v574
      %v1768 = vpop.f32.mrf.mxu0
      %v1769 = vadd.f32 0.0, %v1768
      %v1770 = vpop.f32.mrf.mxu0
      %v1771 = vadd.f32 0.0, %v1770
      %v1772 = vpop.f32.mrf.mxu0
      %v1773 = vadd.f32 0.0, %v1772
      %v1774 = vpop.f32.mrf.mxu0
      %v1775 = vadd.f32 0.0, %v1774
      %1776 = vmatprep.mubr.bf16.mxu0 %v579
      %1777 = vmatmul.mubr.bf16.gmra.mxu0 %v578
      %v1778 = vpop.f32.mrf.mxu0
      %v1779 = vadd.f32 0.0, %v1778
      %v1780 = vpop.f32.mrf.mxu0
      %v1781 = vadd.f32 0.0, %v1780
      %v1782 = vpop.f32.mrf.mxu0
      %v1783 = vadd.f32 0.0, %v1782
      %v1784 = vpop.f32.mrf.mxu0
      %v1785 = vadd.f32 0.0, %v1784
      %1786 = vmatprep.mubr.bf16.mxu0 %v583
      %1787 = vmatmul.mubr.bf16.gmra.mxu0 %v582
      %v1788 = vpop.f32.mrf.mxu0
      %v1789 = vadd.f32 0.0, %v1788
      %v1790 = vpop.f32.mrf.mxu0
      %v1791 = vadd.f32 0.0, %v1790
      %v1792 = vpop.f32.mrf.mxu0
      %v1793 = vadd.f32 0.0, %v1792
      %v1794 = vpop.f32.mrf.mxu0
      %v1795 = vadd.f32 0.0, %v1794
      %1796 = vmatprep.mubr.bf16.mxu0 %v587
      %1797 = vmatmul.mubr.bf16.gmra.mxu0 %v586
      %v1798 = vpop.f32.mrf.mxu0
      %v1799 = vadd.f32 0.0, %v1798
      %v1800 = vpop.f32.mrf.mxu0
      %v1801 = vadd.f32 0.0, %v1800
      %v1802 = vpop.f32.mrf.mxu0
      %v1803 = vadd.f32 0.0, %v1802
      %v1804 = vpop.f32.mrf.mxu0
      %v1805 = vadd.f32 0.0, %v1804
      %1806 = vmatprep.mubr.bf16.mxu0 %v591
      %1807 = vmatmul.mubr.bf16.gmra.mxu0 %v590
      %v1808 = vpop.f32.mrf.mxu0
      %v1809 = vadd.f32 0.0, %v1808
      %v1810 = vpop.f32.mrf.mxu0
      %v1811 = vadd.f32 0.0, %v1810
      %v1812 = vpop.f32.mrf.mxu0
      %v1813 = vadd.f32 0.0, %v1812
      %v1814 = vpop.f32.mrf.mxu0
      %v1815 = vadd.f32 0.0, %v1814
      %1816 = vmatprep.mubr.bf16.mxu0 %v595
      %1817 = vmatmul.mubr.bf16.gmra.mxu0 %v594
      %v1818 = vpop.f32.mrf.mxu0
      %v1819 = vadd.f32 0.0, %v1818
      %v1820 = vpop.f32.mrf.mxu0
      %v1821 = vadd.f32 0.0, %v1820
      %v1822 = vpop.f32.mrf.mxu0
      %v1823 = vadd.f32 0.0, %v1822
      %v1824 = vpop.f32.mrf.mxu0
      %v1825 = vadd.f32 0.0, %v1824
      %1826 = vmatprep.mubr.bf16.mxu0 %v599
      %1827 = vmatmul.mubr.bf16.gmra.mxu0 %v598
      %v1828 = vpop.f32.mrf.mxu0
      %v1829 = vadd.f32 0.0, %v1828
      %v1830 = vpop.f32.mrf.mxu0
      %v1831 = vadd.f32 0.0, %v1830
      %v1832 = vpop.f32.mrf.mxu0
      %v1833 = vadd.f32 0.0, %v1832
      %v1834 = vpop.f32.mrf.mxu0
      %v1835 = vadd.f32 0.0, %v1834
      %1836 = vmatprep.mubr.bf16.mxu0 %v603
      %1837 = vmatmul.mubr.bf16.gmra.mxu0 %v602
      %v1838 = vpop.f32.mrf.mxu0
      %v1839 = vadd.f32 0.0, %v1838
      %v1840 = vpop.f32.mrf.mxu0
      %v1841 = vadd.f32 0.0, %v1840
      %v1842 = vpop.f32.mrf.mxu0
      %v1843 = vadd.f32 0.0, %v1842
      %v1844 = vpop.f32.mrf.mxu0
      %v1845 = vadd.f32 0.0, %v1844
      %1846 = vmatprep.mubr.bf16.mxu0 %v607
      %1847 = vmatmul.mubr.bf16.gmra.mxu0 %v606
      %v1848 = vpop.f32.mrf.mxu0
      %v1849 = vadd.f32 0.0, %v1848
      %v1850 = vpop.f32.mrf.mxu0
      %v1851 = vadd.f32 0.0, %v1850
      %v1852 = vpop.f32.mrf.mxu0
      %v1853 = vadd.f32 0.0, %v1852
      %v1854 = vpop.f32.mrf.mxu0
      %v1855 = vadd.f32 0.0, %v1854
      %1856 = vmatprep.mubr.bf16.mxu0 %v611
      %1857 = vmatmul.mubr.bf16.gmra.mxu0 %v610
      %v1858 = vpop.f32.mrf.mxu0
      %v1859 = vadd.f32 0.0, %v1858
      %v1860 = vpop.f32.mrf.mxu0
      %v1861 = vadd.f32 0.0, %v1860
      %v1862 = vpop.f32.mrf.mxu0
      %v1863 = vadd.f32 0.0, %v1862
      %v1864 = vpop.f32.mrf.mxu0
      %v1865 = vadd.f32 0.0, %v1864
      %1866 = vmatprep.mubr.bf16.mxu0 %v615
      %1867 = vmatmul.mubr.bf16.gmra.mxu0 %v614
      %v1868 = vpop.f32.mrf.mxu0
      %v1869 = vadd.f32 0.0, %v1868
      %v1870 = vpop.f32.mrf.mxu0
      %v1871 = vadd.f32 0.0, %v1870
      %v1872 = vpop.f32.mrf.mxu0
      %v1873 = vadd.f32 0.0, %v1872
      %v1874 = vpop.f32.mrf.mxu0
      %v1875 = vadd.f32 0.0, %v1874
      %1876 = vmatprep.mubr.bf16.mxu0 %v619
      %1877 = vmatmul.mubr.bf16.gmra.mxu0 %v618
      %v1878 = vpop.f32.mrf.mxu0
      %v1879 = vadd.f32 0.0, %v1878
      %v1880 = vpop.f32.mrf.mxu0
      %v1881 = vadd.f32 0.0, %v1880
      %v1882 = vpop.f32.mrf.mxu0
      %v1883 = vadd.f32 0.0, %v1882
      %v1884 = vpop.f32.mrf.mxu0
      %v1885 = vadd.f32 0.0, %v1884
      %1886 = vmatprep.mubr.bf16.mxu0 %v623
      %1887 = vmatmul.mubr.bf16.gmra.mxu0 %v622
      %v1888 = vpop.f32.mrf.mxu0
      %v1889 = vadd.f32 0.0, %v1888
      %v1890 = vpop.f32.mrf.mxu0
      %v1891 = vadd.f32 0.0, %v1890
      %v1892 = vpop.f32.mrf.mxu0
      %v1893 = vadd.f32 0.0, %v1892
      %v1894 = vpop.f32.mrf.mxu0
      %v1895 = vadd.f32 0.0, %v1894
      %1896 = vmatprep.mubr.bf16.mxu0 %v627
      %1897 = vmatmul.mubr.bf16.gmra.mxu0 %v626
      %v1898 = vpop.f32.mrf.mxu0
      %v1899 = vadd.f32 0.0, %v1898
      %v1900 = vpop.f32.mrf.mxu0
      %v1901 = vadd.f32 0.0, %v1900
      %v1902 = vpop.f32.mrf.mxu0
      %v1903 = vadd.f32 0.0, %v1902
      %v1904 = vpop.f32.mrf.mxu0
      %v1905 = vadd.f32 0.0, %v1904
      %1906 = vmatprep.mubr.bf16.mxu0 %v631
      %1907 = vmatmul.mubr.bf16.gmra.mxu0 %v630
      %v1908 = vpop.f32.mrf.mxu0
      %v1909 = vadd.f32 0.0, %v1908
      %v1910 = vpop.f32.mrf.mxu0
      %v1911 = vadd.f32 0.0, %v1910
      %v1912 = vpop.f32.mrf.mxu0
      %v1913 = vadd.f32 0.0, %v1912
      %v1914 = vpop.f32.mrf.mxu0
      %v1915 = vadd.f32 0.0, %v1914
      %1916 = vdwg.mxu0
      %1917 = vmatprep.subr.bf16.mxu0 %v1177
      %1918 = vmatpush1.bf16.msra.mxu0 %v1176
      %1919 = vmatprep.subr.bf16.mxu0 %v1173
      %1920 = vmatpush1.bf16.msra.mxu0 %v1172
      %1921 = vmatprep.subr.bf16.mxu0 %v1169
      %1922 = vmatpush1.bf16.msra.mxu0 %v1168
      %1923 = vmatprep.subr.bf16.mxu0 %v1165
      %1924 = vmatpush1.bf16.msra.mxu0 %v1164
      %1925 = vmatprep.subr.bf16.mxu0 %v1161
      %1926 = vmatpush1.bf16.msra.mxu0 %v1160
      %1927 = vmatprep.subr.bf16.mxu0 %v1157
      %1928 = vmatpush1.bf16.msra.mxu0 %v1156
      %1929 = vmatprep.subr.bf16.mxu0 %v1153
      %1930 = vmatpush1.bf16.msra.mxu0 %v1152
      %1931 = vmatprep.subr.bf16.mxu0 %v1149
      %1932 = vmatpush1.bf16.msra.mxu0 %v1148
      %1933 = vmatprep.subr.bf16.mxu0 %v1209
      %1934 = vmatpush2.bf16.msra.mxu0 %v1208
      %1935 = vmatprep.subr.bf16.mxu0 %v1205
      %1936 = vmatpush2.bf16.msra.mxu0 %v1204
      %1937 = vmatprep.subr.bf16.mxu0 %v1201
      %1938 = vmatpush2.bf16.msra.mxu0 %v1200
      %1939 = vmatprep.subr.bf16.mxu0 %v1197
      %1940 = vmatpush2.bf16.msra.mxu0 %v1196
      %1941 = vmatprep.subr.bf16.mxu0 %v1193
      %1942 = vmatpush2.bf16.msra.mxu0 %v1192
      %1943 = vmatprep.subr.bf16.mxu0 %v1189
      %1944 = vmatpush2.bf16.msra.mxu0 %v1188
      %1945 = vmatprep.subr.bf16.mxu0 %v1185
      %1946 = vmatpush2.bf16.msra.mxu0 %v1184
      %1947 = vmatprep.subr.bf16.mxu0 %v1181
      %1948 = vmatpush2.bf16.msra.mxu0 %v1180
      %1949 = vmatprep.mubr.bf16.mxu0 %v573
      %1950 = vmatmul.mubr.bf16.gmra.mxu0 %v572
      %v1951 = vpop.f32.mrf.mxu0
      %v1952 = vadd.f32 %v1759, %v1951
      %v1953 = vpop.f32.mrf.mxu0
      %v1954 = vadd.f32 %v1761, %v1953
      %v1955 = vpop.f32.mrf.mxu0
      %v1956 = vadd.f32 %v1763, %v1955
      %v1957 = vpop.f32.mrf.mxu0
      %v1958 = vadd.f32 %v1765, %v1957
      %1959 = vmatprep.mubr.bf16.mxu0 %v577
      %1960 = vmatmul.mubr.bf16.gmra.mxu0 %v576
      %v1961 = vpop.f32.mrf.mxu0
      %v1962 = vadd.f32 %v1769, %v1961
      %v1963 = vpop.f32.mrf.mxu0
      %v1964 = vadd.f32 %v1771, %v1963
      %v1965 = vpop.f32.mrf.mxu0
      %v1966 = vadd.f32 %v1773, %v1965
      %v1967 = vpop.f32.mrf.mxu0
      %v1968 = vadd.f32 %v1775, %v1967
      %1969 = vmatprep.mubr.bf16.mxu0 %v581
      %1970 = vmatmul.mubr.bf16.gmra.mxu0 %v580
      %v1971 = vpop.f32.mrf.mxu0
      %v1972 = vadd.f32 %v1779, %v1971
      %v1973 = vpop.f32.mrf.mxu0
      %v1974 = vadd.f32 %v1781, %v1973
      %v1975 = vpop.f32.mrf.mxu0
      %v1976 = vadd.f32 %v1783, %v1975
      %v1977 = vpop.f32.mrf.mxu0
      %v1978 = vadd.f32 %v1785, %v1977
      %1979 = vmatprep.mubr.bf16.mxu0 %v585
      %1980 = vmatmul.mubr.bf16.gmra.mxu0 %v584
      %v1981 = vpop.f32.mrf.mxu0
      %v1982 = vadd.f32 %v1789, %v1981
      %v1983 = vpop.f32.mrf.mxu0
      %v1984 = vadd.f32 %v1791, %v1983
      %v1985 = vpop.f32.mrf.mxu0
      %v1986 = vadd.f32 %v1793, %v1985
      %v1987 = vpop.f32.mrf.mxu0
      %v1988 = vadd.f32 %v1795, %v1987
      %1989 = vmatprep.mubr.bf16.mxu0 %v589
      %1990 = vmatmul.mubr.bf16.gmra.mxu0 %v588
      %v1991 = vpop.f32.mrf.mxu0
      %v1992 = vadd.f32 %v1799, %v1991
      %v1993 = vpop.f32.mrf.mxu0
      %v1994 = vadd.f32 %v1801, %v1993
      %v1995 = vpop.f32.mrf.mxu0
      %v1996 = vadd.f32 %v1803, %v1995
      %v1997 = vpop.f32.mrf.mxu0
      %v1998 = vadd.f32 %v1805, %v1997
      %1999 = vmatprep.mubr.bf16.mxu0 %v593
      %2000 = vmatmul.mubr.bf16.gmra.mxu0 %v592
      %v2001 = vpop.f32.mrf.mxu0
      %v2002 = vadd.f32 %v1809, %v2001
      %v2003 = vpop.f32.mrf.mxu0
      %v2004 = vadd.f32 %v1811, %v2003
      %v2005 = vpop.f32.mrf.mxu0
      %v2006 = vadd.f32 %v1813, %v2005
      %v2007 = vpop.f32.mrf.mxu0
      %v2008 = vadd.f32 %v1815, %v2007
      %2009 = vmatprep.mubr.bf16.mxu0 %v597
      %2010 = vmatmul.mubr.bf16.gmra.mxu0 %v596
      %v2011 = vpop.f32.mrf.mxu0
      %v2012 = vadd.f32 %v1819, %v2011
      %v2013 = vpop.f32.mrf.mxu0
      %v2014 = vadd.f32 %v1821, %v2013
      %v2015 = vpop.f32.mrf.mxu0
      %v2016 = vadd.f32 %v1823, %v2015
      %v2017 = vpop.f32.mrf.mxu0
      %v2018 = vadd.f32 %v1825, %v2017
      %2019 = vmatprep.mubr.bf16.mxu0 %v601
      %2020 = vmatmul.mubr.bf16.gmra.mxu0 %v600
      %v2021 = vpop.f32.mrf.mxu0
      %v2022 = vadd.f32 %v1829, %v2021
      %v2023 = vpop.f32.mrf.mxu0
      %v2024 = vadd.f32 %v1831, %v2023
      %v2025 = vpop.f32.mrf.mxu0
      %v2026 = vadd.f32 %v1833, %v2025
      %v2027 = vpop.f32.mrf.mxu0
      %v2028 = vadd.f32 %v1835, %v2027
      %2029 = vmatprep.mubr.bf16.mxu0 %v605
      %2030 = vmatmul.mubr.bf16.gmra.mxu0 %v604
      %v2031 = vpop.f32.mrf.mxu0
      %v2032 = vadd.f32 %v1839, %v2031
      %v2033 = vpop.f32.mrf.mxu0
      %v2034 = vadd.f32 %v1841, %v2033
      %v2035 = vpop.f32.mrf.mxu0
      %v2036 = vadd.f32 %v1843, %v2035
      %v2037 = vpop.f32.mrf.mxu0
      %v2038 = vadd.f32 %v1845, %v2037
      %2039 = vmatprep.mubr.bf16.mxu0 %v609
      %2040 = vmatmul.mubr.bf16.gmra.mxu0 %v608
      %v2041 = vpop.f32.mrf.mxu0
      %v2042 = vadd.f32 %v1849, %v2041
      %v2043 = vpop.f32.mrf.mxu0
      %v2044 = vadd.f32 %v1851, %v2043
      %v2045 = vpop.f32.mrf.mxu0
      %v2046 = vadd.f32 %v1853, %v2045
      %v2047 = vpop.f32.mrf.mxu0
      %v2048 = vadd.f32 %v1855, %v2047
      %2049 = vmatprep.mubr.bf16.mxu0 %v613
      %2050 = vmatmul.mubr.bf16.gmra.mxu0 %v612
      %v2051 = vpop.f32.mrf.mxu0
      %v2052 = vadd.f32 %v1859, %v2051
      %v2053 = vpop.f32.mrf.mxu0
      %v2054 = vadd.f32 %v1861, %v2053
      %v2055 = vpop.f32.mrf.mxu0
      %v2056 = vadd.f32 %v1863, %v2055
      %v2057 = vpop.f32.mrf.mxu0
      %v2058 = vadd.f32 %v1865, %v2057
      %2059 = vmatprep.mubr.bf16.mxu0 %v617
      %2060 = vmatmul.mubr.bf16.gmra.mxu0 %v616
      %v2061 = vpop.f32.mrf.mxu0
      %v2062 = vadd.f32 %v1869, %v2061
      %v2063 = vpop.f32.mrf.mxu0
      %v2064 = vadd.f32 %v1871, %v2063
      %v2065 = vpop.f32.mrf.mxu0
      %v2066 = vadd.f32 %v1873, %v2065
      %v2067 = vpop.f32.mrf.mxu0
      %v2068 = vadd.f32 %v1875, %v2067
      %2069 = vmatprep.mubr.bf16.mxu0 %v621
      %2070 = vmatmul.mubr.bf16.gmra.mxu0 %v620
      %v2071 = vpop.f32.mrf.mxu0
      %v2072 = vadd.f32 %v1879, %v2071
      %v2073 = vpop.f32.mrf.mxu0
      %v2074 = vadd.f32 %v1881, %v2073
      %v2075 = vpop.f32.mrf.mxu0
      %v2076 = vadd.f32 %v1883, %v2075
      %v2077 = vpop.f32.mrf.mxu0
      %v2078 = vadd.f32 %v1885, %v2077
      %2079 = vmatprep.mubr.bf16.mxu0 %v625
      %2080 = vmatmul.mubr.bf16.gmra.mxu0 %v624
      %v2081 = vpop.f32.mrf.mxu0
      %v2082 = vadd.f32 %v1889, %v2081
      %v2083 = vpop.f32.mrf.mxu0
      %v2084 = vadd.f32 %v1891, %v2083
      %v2085 = vpop.f32.mrf.mxu0
      %v2086 = vadd.f32 %v1893, %v2085
      %v2087 = vpop.f32.mrf.mxu0
      %v2088 = vadd.f32 %v1895, %v2087
      %2089 = vmatprep.mubr.bf16.mxu0 %v629
      %2090 = vmatmul.mubr.bf16.gmra.mxu0 %v628
      %v2091 = vpop.f32.mrf.mxu0
      %v2092 = vadd.f32 %v1899, %v2091
      %v2093 = vpop.f32.mrf.mxu0
      %v2094 = vadd.f32 %v1901, %v2093
      %v2095 = vpop.f32.mrf.mxu0
      %v2096 = vadd.f32 %v1903, %v2095
      %v2097 = vpop.f32.mrf.mxu0
      %v2098 = vadd.f32 %v1905, %v2097
      %2099 = vmatprep.mubr.bf16.mxu0 %v633
      %2100 = vmatmul.mubr.bf16.gmra.mxu0 %v632
      %v2101 = vpop.f32.mrf.mxu0
      %v2102 = vadd.f32 %v1909, %v2101
      %v2103 = vpop.f32.mrf.mxu0
      %v2104 = vadd.f32 %v1911, %v2103
      %v2105 = vpop.f32.mrf.mxu0
      %v2106 = vadd.f32 %v1913, %v2105
      %v2107 = vpop.f32.mrf.mxu0
      %v2108 = vadd.f32 %v1915, %v2107
      %2109 = vdwg.mxu0
      %v2110 = vmul.f32 %v1566, %v1566
      %v2111 = vmul.f32 %v1568, %v1568
      %v2112 = vmul.f32 %v1570, %v1570
      %v2113 = vmul.f32 %v1572, %v1572
      %v2114 = vmul.f32 %v1576, %v1576
      %v2115 = vmul.f32 %v1578, %v1578
      %v2116 = vmul.f32 %v1580, %v1580
      %v2117 = vmul.f32 %v1582, %v1582
      %v2118 = vmul.f32 %v1586, %v1586
      %v2119 = vmul.f32 %v1588, %v1588
      %v2120 = vmul.f32 %v1590, %v1590
      %v2121 = vmul.f32 %v1592, %v1592
      %v2122 = vmul.f32 %v1596, %v1596
      %v2123 = vmul.f32 %v1598, %v1598
      %v2124 = vmul.f32 %v1600, %v1600
      %v2125 = vmul.f32 %v1602, %v1602
      %v2126 = vmul.f32 %v1606, %v1606
      %v2127 = vmul.f32 %v1608, %v1608
      %v2128 = vmul.f32 %v1610, %v1610
      %v2129 = vmul.f32 %v1612, %v1612
      %v2130 = vmul.f32 %v1616, %v1616
      %v2131 = vmul.f32 %v1618, %v1618
      %v2132 = vmul.f32 %v1620, %v1620
      %v2133 = vmul.f32 %v1622, %v1622
      %v2134 = vmul.f32 %v1626, %v1626
      %v2135 = vmul.f32 %v1628, %v1628
      %v2136 = vmul.f32 %v1630, %v1630
      %v2137 = vmul.f32 %v1632, %v1632
      %v2138 = vmul.f32 %v1636, %v1636
      %v2139 = vmul.f32 %v1638, %v1638
      %v2140 = vmul.f32 %v1640, %v1640
      %v2141 = vmul.f32 %v1642, %v1642
      %v2142 = vmul.f32 %v1646, %v1646
      %v2143 = vmul.f32 %v1648, %v1648
      %v2144 = vmul.f32 %v1650, %v1650
      %v2145 = vmul.f32 %v1652, %v1652
      %v2146 = vmul.f32 %v1656, %v1656
      %v2147 = vmul.f32 %v1658, %v1658
      %v2148 = vmul.f32 %v1660, %v1660
      %v2149 = vmul.f32 %v1662, %v1662
      %v2150 = vmul.f32 %v1666, %v1666
      %v2151 = vmul.f32 %v1668, %v1668
      %v2152 = vmul.f32 %v1670, %v1670
      %v2153 = vmul.f32 %v1672, %v1672
      %v2154 = vmul.f32 %v1676, %v1676
      %v2155 = vmul.f32 %v1678, %v1678
      %v2156 = vmul.f32 %v1680, %v1680
      %v2157 = vmul.f32 %v1682, %v1682
      %v2158 = vmul.f32 %v1686, %v1686
      %v2159 = vmul.f32 %v1688, %v1688
      %v2160 = vmul.f32 %v1690, %v1690
      %v2161 = vmul.f32 %v1692, %v1692
      %v2162 = vmul.f32 %v1696, %v1696
      %v2163 = vmul.f32 %v1698, %v1698
      %v2164 = vmul.f32 %v1700, %v1700
      %v2165 = vmul.f32 %v1702, %v1702
      %v2166 = vmul.f32 %v1706, %v1706
      %v2167 = vmul.f32 %v1708, %v1708
      %v2168 = vmul.f32 %v1710, %v1710
      %v2169 = vmul.f32 %v1712, %v1712
      %v2170 = vmul.f32 %v1716, %v1716
      %v2171 = vmul.f32 %v1718, %v1718
      %v2172 = vmul.f32 %v1720, %v1720
      %v2173 = vmul.f32 %v1722, %v1722
      %v2174 = vmul.f32 %v1952, %v1952
      %v2175 = vmul.f32 %v1954, %v1954
      %v2176 = vmul.f32 %v1956, %v1956
      %v2177 = vmul.f32 %v1958, %v1958
      %v2178 = vmul.f32 %v1962, %v1962
      %v2179 = vmul.f32 %v1964, %v1964
      %v2180 = vmul.f32 %v1966, %v1966
      %v2181 = vmul.f32 %v1968, %v1968
      %v2182 = vmul.f32 %v1972, %v1972
      %v2183 = vmul.f32 %v1974, %v1974
      %v2184 = vmul.f32 %v1976, %v1976
      %v2185 = vmul.f32 %v1978, %v1978
      %v2186 = vmul.f32 %v1982, %v1982
      %v2187 = vmul.f32 %v1984, %v1984
      %v2188 = vmul.f32 %v1986, %v1986
      %v2189 = vmul.f32 %v1988, %v1988
      %v2190 = vmul.f32 %v1992, %v1992
      %v2191 = vmul.f32 %v1994, %v1994
      %v2192 = vmul.f32 %v1996, %v1996
      %v2193 = vmul.f32 %v1998, %v1998
      %v2194 = vmul.f32 %v2002, %v2002
      %v2195 = vmul.f32 %v2004, %v2004
      %v2196 = vmul.f32 %v2006, %v2006
      %v2197 = vmul.f32 %v2008, %v2008
      %v2198 = vmul.f32 %v2012, %v2012
      %v2199 = vmul.f32 %v2014, %v2014
      %v2200 = vmul.f32 %v2016, %v2016
      %v2201 = vmul.f32 %v2018, %v2018
      %v2202 = vmul.f32 %v2022, %v2022
      %v2203 = vmul.f32 %v2024, %v2024
      %v2204 = vmul.f32 %v2026, %v2026
      %v2205 = vmul.f32 %v2028, %v2028
      %v2206 = vmul.f32 %v2032, %v2032
      %v2207 = vmul.f32 %v2034, %v2034
      %v2208 = vmul.f32 %v2036, %v2036
      %v2209 = vmul.f32 %v2038, %v2038
      %v2210 = vmul.f32 %v2042, %v2042
      %v2211 = vmul.f32 %v2044, %v2044
      %v2212 = vmul.f32 %v2046, %v2046
      %v2213 = vmul.f32 %v2048, %v2048
      %v2214 = vmul.f32 %v2052, %v2052
      %v2215 = vmul.f32 %v2054, %v2054
      %v2216 = vmul.f32 %v2056, %v2056
      %v2217 = vmul.f32 %v2058, %v2058
      %v2218 = vmul.f32 %v2062, %v2062
      %v2219 = vmul.f32 %v2064, %v2064
      %v2220 = vmul.f32 %v2066, %v2066
      %v2221 = vmul.f32 %v2068, %v2068
      %v2222 = vmul.f32 %v2072, %v2072
      %v2223 = vmul.f32 %v2074, %v2074
      %v2224 = vmul.f32 %v2076, %v2076
      %v2225 = vmul.f32 %v2078, %v2078
      %v2226 = vmul.f32 %v2082, %v2082
      %v2227 = vmul.f32 %v2084, %v2084
      %v2228 = vmul.f32 %v2086, %v2086
      %v2229 = vmul.f32 %v2088, %v2088
      %v2230 = vmul.f32 %v2092, %v2092
      %v2231 = vmul.f32 %v2094, %v2094
      %v2232 = vmul.f32 %v2096, %v2096
      %v2233 = vmul.f32 %v2098, %v2098
      %v2234 = vmul.f32 %v2102, %v2102
      %v2235 = vmul.f32 %v2104, %v2104
      %v2236 = vmul.f32 %v2106, %v2106
      %v2237 = vmul.f32 %v2108, %v2108
      %v2238 = vadd.f32 %v2110, %v2174
      %v2239 = vadd.f32 %v2111, %v2175
      %v2240 = vadd.f32 %v2112, %v2176
      %v2241 = vadd.f32 %v2113, %v2177
      %v2242 = vadd.f32 %v2114, %v2178
      %v2243 = vadd.f32 %v2115, %v2179
      %v2244 = vadd.f32 %v2116, %v2180
      %v2245 = vadd.f32 %v2117, %v2181
      %v2246 = vadd.f32 %v2118, %v2182
      %v2247 = vadd.f32 %v2119, %v2183
      %v2248 = vadd.f32 %v2120, %v2184
      %v2249 = vadd.f32 %v2121, %v2185
      %v2250 = vadd.f32 %v2122, %v2186
      %v2251 = vadd.f32 %v2123, %v2187
      %v2252 = vadd.f32 %v2124, %v2188
      %v2253 = vadd.f32 %v2125, %v2189
      %v2254 = vadd.f32 %v2126, %v2190
      %v2255 = vadd.f32 %v2127, %v2191
      %v2256 = vadd.f32 %v2128, %v2192
      %v2257 = vadd.f32 %v2129, %v2193
      %v2258 = vadd.f32 %v2130, %v2194
      %v2259 = vadd.f32 %v2131, %v2195
      %v2260 = vadd.f32 %v2132, %v2196
      %v2261 = vadd.f32 %v2133, %v2197
      %v2262 = vadd.f32 %v2134, %v2198
      %v2263 = vadd.f32 %v2135, %v2199
      %v2264 = vadd.f32 %v2136, %v2200
      %v2265 = vadd.f32 %v2137, %v2201
      %v2266 = vadd.f32 %v2138, %v2202
      %v2267 = vadd.f32 %v2139, %v2203
      %v2268 = vadd.f32 %v2140, %v2204
      %v2269 = vadd.f32 %v2141, %v2205
      %v2270 = vadd.f32 %v2142, %v2206
      %v2271 = vadd.f32 %v2143, %v2207
      %v2272 = vadd.f32 %v2144, %v2208
      %v2273 = vadd.f32 %v2145, %v2209
      %v2274 = vadd.f32 %v2146, %v2210
      %v2275 = vadd.f32 %v2147, %v2211
      %v2276 = vadd.f32 %v2148, %v2212
      %v2277 = vadd.f32 %v2149, %v2213
      %v2278 = vadd.f32 %v2150, %v2214
      %v2279 = vadd.f32 %v2151, %v2215
      %v2280 = vadd.f32 %v2152, %v2216
      %v2281 = vadd.f32 %v2153, %v2217
      %v2282 = vadd.f32 %v2154, %v2218
      %v2283 = vadd.f32 %v2155, %v2219
      %v2284 = vadd.f32 %v2156, %v2220
      %v2285 = vadd.f32 %v2157, %v2221
      %v2286 = vadd.f32 %v2158, %v2222
      %v2287 = vadd.f32 %v2159, %v2223
      %v2288 = vadd.f32 %v2160, %v2224
      %v2289 = vadd.f32 %v2161, %v2225
      %v2290 = vadd.f32 %v2162, %v2226
      %v2291 = vadd.f32 %v2163, %v2227
      %v2292 = vadd.f32 %v2164, %v2228
      %v2293 = vadd.f32 %v2165, %v2229
      %v2294 = vadd.f32 %v2166, %v2230
      %v2295 = vadd.f32 %v2167, %v2231
      %v2296 = vadd.f32 %v2168, %v2232
      %v2297 = vadd.f32 %v2169, %v2233
      %v2298 = vadd.f32 %v2170, %v2234
      %v2299 = vadd.f32 %v2171, %v2235
      %v2300 = vadd.f32 %v2172, %v2236
      %v2301 = vadd.f32 %v2173, %v2237
      %2302 = vxpose.xlu0.b32.start [1/16] %v2238, 128
      %2303 = vxpose.xlu0.b32.cont [2/16] %v2240, 128
      %2304 = vxpose.xlu0.b32.cont [3/16] %v2242, 128
      %2305 = vxpose.xlu0.b32.cont [4/16] %v2244, 128
      %2306 = vxpose.xlu0.b32.cont [5/16] %v2246, 128
      %2307 = vxpose.xlu0.b32.cont [6/16] %v2248, 128
      %2308 = vxpose.xlu0.b32.cont [7/16] %v2250, 128
      %2309 = vxpose.xlu0.b32.cont [8/16] %v2252, 128
      %2310 = vxpose.xlu0.b32.cont [9/16] %v2254, 128
      %2311 = vxpose.xlu0.b32.cont [10/16] %v2256, 128
      %2312 = vxpose.xlu0.b32.cont [11/16] %v2258, 128
      %2313 = vxpose.xlu0.b32.cont [12/16] %v2260, 128
      %2314 = vxpose.xlu0.b32.cont [13/16] %v2262, 128
      %2315 = vxpose.xlu0.b32.cont [14/16] %v2264, 128
      %2316 = vxpose.xlu0.b32.cont [15/16] %v2266, 128
      %2317 = vxpose.xlu0.b32.end [16/16] %v2268, 128
      %v2318 = vpop.trf.xlu0
      %v2319 = vpop.trf.xlu0
      %v2320 = vpop.trf.xlu0
      %v2321 = vpop.trf.xlu0
      %v2322 = vpop.trf.xlu0
      %v2323 = vpop.trf.xlu0
      %v2324 = vpop.trf.xlu0
      %v2325 = vpop.trf.xlu0
      %v2326 = vpop.trf.xlu0
      %v2327 = vpop.trf.xlu0
      %v2328 = vpop.trf.xlu0
      %v2329 = vpop.trf.xlu0
      %v2330 = vpop.trf.xlu0
      %v2331 = vpop.trf.xlu0
      %v2332 = vpop.trf.xlu0
      %v2333 = vpop.trf.xlu0
      %2334 = vxpose.xlu0.b32.start [1/16] %v2239, 128
      %2335 = vxpose.xlu0.b32.cont [2/16] %v2241, 128
      %2336 = vxpose.xlu0.b32.cont [3/16] %v2243, 128
      %2337 = vxpose.xlu0.b32.cont [4/16] %v2245, 128
      %2338 = vxpose.xlu0.b32.cont [5/16] %v2247, 128
      %2339 = vxpose.xlu0.b32.cont [6/16] %v2249, 128
      %2340 = vxpose.xlu0.b32.cont [7/16] %v2251, 128
      %2341 = vxpose.xlu0.b32.cont [8/16] %v2253, 128
      %2342 = vxpose.xlu0.b32.cont [9/16] %v2255, 128
      %2343 = vxpose.xlu0.b32.cont [10/16] %v2257, 128
      %2344 = vxpose.xlu0.b32.cont [11/16] %v2259, 128
      %2345 = vxpose.xlu0.b32.cont [12/16] %v2261, 128
      %2346 = vxpose.xlu0.b32.cont [13/16] %v2263, 128
      %2347 = vxpose.xlu0.b32.cont [14/16] %v2265, 128
      %2348 = vxpose.xlu0.b32.cont [15/16] %v2267, 128
      %2349 = vxpose.xlu0.b32.end [16/16] %v2269, 128
      %v2350 = vpop.trf.xlu0
      %v2351 = vpop.trf.xlu0
      %v2352 = vpop.trf.xlu0
      %v2353 = vpop.trf.xlu0
      %v2354 = vpop.trf.xlu0
      %v2355 = vpop.trf.xlu0
      %v2356 = vpop.trf.xlu0
      %v2357 = vpop.trf.xlu0
      %v2358 = vpop.trf.xlu0
      %v2359 = vpop.trf.xlu0
      %v2360 = vpop.trf.xlu0
      %v2361 = vpop.trf.xlu0
      %v2362 = vpop.trf.xlu0
      %v2363 = vpop.trf.xlu0
      %v2364 = vpop.trf.xlu0
      %v2365 = vpop.trf.xlu0
      %2366 = vxpose.xlu0.b32.start [1/16] %v2270, 128
      %2367 = vxpose.xlu0.b32.cont [2/16] %v2272, 128
      %2368 = vxpose.xlu0.b32.cont [3/16] %v2274, 128
      %2369 = vxpose.xlu0.b32.cont [4/16] %v2276, 128
      %2370 = vxpose.xlu0.b32.cont [5/16] %v2278, 128
      %2371 = vxpose.xlu0.b32.cont [6/16] %v2280, 128
      %2372 = vxpose.xlu0.b32.cont [7/16] %v2282, 128
      %2373 = vxpose.xlu0.b32.cont [8/16] %v2284, 128
      %2374 = vxpose.xlu0.b32.cont [9/16] %v2286, 128
      %2375 = vxpose.xlu0.b32.cont [10/16] %v2288, 128
      %2376 = vxpose.xlu0.b32.cont [11/16] %v2290, 128
      %2377 = vxpose.xlu0.b32.cont [12/16] %v2292, 128
      %2378 = vxpose.xlu0.b32.cont [13/16] %v2294, 128
      %2379 = vxpose.xlu0.b32.cont [14/16] %v2296, 128
      %2380 = vxpose.xlu0.b32.cont [15/16] %v2298, 128
      %2381 = vxpose.xlu0.b32.end [16/16] %v2300, 128
      %v2382 = vpop.trf.xlu0
      %v2383 = vpop.trf.xlu0
      %v2384 = vpop.trf.xlu0
      %v2385 = vpop.trf.xlu0
      %v2386 = vpop.trf.xlu0
      %v2387 = vpop.trf.xlu0
      %v2388 = vpop.trf.xlu0
      %v2389 = vpop.trf.xlu0
      %v2390 = vpop.trf.xlu0
      %v2391 = vpop.trf.xlu0
      %v2392 = vpop.trf.xlu0
      %v2393 = vpop.trf.xlu0
      %v2394 = vpop.trf.xlu0
      %v2395 = vpop.trf.xlu0
      %v2396 = vpop.trf.xlu0
      %v2397 = vpop.trf.xlu0
      %2398 = vxpose.xlu0.b32.start [1/16] %v2271, 128
      %2399 = vxpose.xlu0.b32.cont [2/16] %v2273, 128
      %2400 = vxpose.xlu0.b32.cont [3/16] %v2275, 128
      %2401 = vxpose.xlu0.b32.cont [4/16] %v2277, 128
      %2402 = vxpose.xlu0.b32.cont [5/16] %v2279, 128
      %2403 = vxpose.xlu0.b32.cont [6/16] %v2281, 128
      %2404 = vxpose.xlu0.b32.cont [7/16] %v2283, 128
      %2405 = vxpose.xlu0.b32.cont [8/16] %v2285, 128
      %2406 = vxpose.xlu0.b32.cont [9/16] %v2287, 128
      %2407 = vxpose.xlu0.b32.cont [10/16] %v2289, 128
      %2408 = vxpose.xlu0.b32.cont [11/16] %v2291, 128
      %2409 = vxpose.xlu0.b32.cont [12/16] %v2293, 128
      %2410 = vxpose.xlu0.b32.cont [13/16] %v2295, 128
      %2411 = vxpose.xlu0.b32.cont [14/16] %v2297, 128
      %2412 = vxpose.xlu0.b32.cont [15/16] %v2299, 128
      %2413 = vxpose.xlu0.b32.end [16/16] %v2301, 128
      %v2414 = vpop.trf.xlu0
      %v2415 = vpop.trf.xlu0
      %v2416 = vpop.trf.xlu0
      %v2417 = vpop.trf.xlu0
      %v2418 = vpop.trf.xlu0
      %v2419 = vpop.trf.xlu0
      %v2420 = vpop.trf.xlu0
      %v2421 = vpop.trf.xlu0
      %v2422 = vpop.trf.xlu0
      %v2423 = vpop.trf.xlu0
      %v2424 = vpop.trf.xlu0
      %v2425 = vpop.trf.xlu0
      %v2426 = vpop.trf.xlu0
      %v2427 = vpop.trf.xlu0
      %v2428 = vpop.trf.xlu0
      %v2429 = vpop.trf.xlu0
      %2430 = vst [vmem:[%s184] sm:$0xff] %v2318
      %2431 = vst [vmem:[%s184 + $0x8] sm:$0xff] %v2382
      %2432 = vst [vmem:[%s184 + $0x10] sm:$0xff] %v2319
      %2433 = vst [vmem:[%s184 + $0x18] sm:$0xff] %v2383
      %2434 = vst [vmem:[%s184 + $0x20] sm:$0xff] %v2320
      %2435 = vst [vmem:[%s184 + $0x28] sm:$0xff] %v2384
      %2436 = vst [vmem:[%s184 + $0x30] sm:$0xff] %v2321
      %2437 = vst [vmem:[%s184 + $0x38] sm:$0xff] %v2385
      %2438 = vst [vmem:[%s184 + $0x40] sm:$0xff] %v2322
      %2439 = vst [vmem:[%s184 + $0x48] sm:$0xff] %v2386
      %2440 = vst [vmem:[%s184 + $0x50] sm:$0xff] %v2323
      %2441 = vst [vmem:[%s184 + $0x58] sm:$0xff] %v2387
      %2442 = vst [vmem:[%s184 + $0x60] sm:$0xff] %v2324
      %2443 = vst [vmem:[%s184 + $0x68] sm:$0xff] %v2388
      %2444 = vst [vmem:[%s184 + $0x70] sm:$0xff] %v2325
      %2445 = vst [vmem:[%s184 + $0x78] sm:$0xff] %v2389
      %2446 = vst [vmem:[%s184 + $0x80] sm:$0xff] %v2326
      %2447 = vst [vmem:[%s184 + $0x88] sm:$0xff] %v2390
      %2448 = vst [vmem:[%s184 + $0x90] sm:$0xff] %v2327
      %2449 = vst [vmem:[%s184 + $0x98] sm:$0xff] %v2391
      %2450 = vst [vmem:[%s184 + $0xa0] sm:$0xff] %v2328
      %2451 = vst [vmem:[%s184 + $0xa8] sm:$0xff] %v2392
      %2452 = vst [vmem:[%s184 + $0xb0] sm:$0xff] %v2329
      %2453 = vst [vmem:[%s184 + $0xb8] sm:$0xff] %v2393
      %2454 = vst [vmem:[%s184 + $0xc0] sm:$0xff] %v2330
      %2455 = vst [vmem:[%s184 + $0xc8] sm:$0xff] %v2394
      %2456 = vst [vmem:[%s184 + $0xd0] sm:$0xff] %v2331
      %2457 = vst [vmem:[%s184 + $0xd8] sm:$0xff] %v2395
      %2458 = vst [vmem:[%s184 + $0xe0] sm:$0xff] %v2332
      %2459 = vst [vmem:[%s184 + $0xe8] sm:$0xff] %v2396
      %2460 = vst [vmem:[%s184 + $0xf0] sm:$0xff] %v2333
      %2461 = vst [vmem:[%s184 + $0xf8] sm:$0xff] %v2397
      %2462 = vst [vmem:[%s184 + $0x100] sm:$0xff] %v2350
      %2463 = vst [vmem:[%s184 + $0x108] sm:$0xff] %v2414
      %2464 = vst [vmem:[%s184 + $0x110] sm:$0xff] %v2351
      %2465 = vst [vmem:[%s184 + $0x118] sm:$0xff] %v2415
      %2466 = vst [vmem:[%s184 + $0x120] sm:$0xff] %v2352
      %2467 = vst [vmem:[%s184 + $0x128] sm:$0xff] %v2416
      %2468 = vst [vmem:[%s184 + $0x130] sm:$0xff] %v2353
      %2469 = vst [vmem:[%s184 + $0x138] sm:$0xff] %v2417
      %2470 = vst [vmem:[%s184 + $0x140] sm:$0xff] %v2354
      %2471 = vst [vmem:[%s184 + $0x148] sm:$0xff] %v2418
      %2472 = vst [vmem:[%s184 + $0x150] sm:$0xff] %v2355
      %2473 = vst [vmem:[%s184 + $0x158] sm:$0xff] %v2419
      %2474 = vst [vmem:[%s184 + $0x160] sm:$0xff] %v2356
      %2475 = vst [vmem:[%s184 + $0x168] sm:$0xff] %v2420
      %2476 = vst [vmem:[%s184 + $0x170] sm:$0xff] %v2357
      %2477 = vst [vmem:[%s184 + $0x178] sm:$0xff] %v2421
      %2478 = vst [vmem:[%s184 + $0x180] sm:$0xff] %v2358
      %2479 = vst [vmem:[%s184 + $0x188] sm:$0xff] %v2422
      %2480 = vst [vmem:[%s184 + $0x190] sm:$0xff] %v2359
      %2481 = vst [vmem:[%s184 + $0x198] sm:$0xff] %v2423
      %2482 = vst [vmem:[%s184 + $0x1a0] sm:$0xff] %v2360
      %2483 = vst [vmem:[%s184 + $0x1a8] sm:$0xff] %v2424
      %2484 = vst [vmem:[%s184 + $0x1b0] sm:$0xff] %v2361
      %2485 = vst [vmem:[%s184 + $0x1b8] sm:$0xff] %v2425
      %2486 = vst [vmem:[%s184 + $0x1c0] sm:$0xff] %v2362
      %2487 = vst [vmem:[%s184 + $0x1c8] sm:$0xff] %v2426
      %2488 = vst [vmem:[%s184 + $0x1d0] sm:$0xff] %v2363
      %2489 = vst [vmem:[%s184 + $0x1d8] sm:$0xff] %v2427
      %2490 = vst [vmem:[%s184 + $0x1e0] sm:$0xff] %v2364
      %2491 = vst [vmem:[%s184 + $0x1e8] sm:$0xff] %v2428
      %2492 = vst [vmem:[%s184 + $0x1f0] sm:$0xff] %v2365
      %2493 = vst [vmem:[%s184 + $0x1f8] sm:$0xff] %v2429
      %s2494 = smul.u32 2, %s18
      %p2495 = scmp.lt.s32.totalorder %s17, 3
      %s2496 = scalar_select %p2495, %s17, 3
      %p2497 = scmp.lt.s32.totalorder %s2494, 1
      %s2498 = scalar_select %p2497, %s2494, 1
      %s2499 = smul.addr %s2496, 64
      %s2500 = sadd.s32 %s2498, %s2499
      %s2501 = smul.addr %s2500, 8
      %s2502 = scalar_lea.vmem %s2, %s2501
      // Predicated region
      $region29: #{stft_layer_forward.1} parent=27 // pred_check
        %p2503 = pneg %p94
      $region30: #{stft_layer_forward.1} parent=27 // pred_check_branch
        %2505 = sbr.rel (%p2503) target = $region32
      $region31: #{stft_layer_forward.1} parent=27 // pred_region
        %s2506 = smul.u32 2, %s18
      $region32: #{stft_layer_forward.1} parent=27 // pred_fallthru
        _
    $region28: #{stft_layer_forward.1} parent=5 // pred_fallthru
      _
    %p2507 = scmp.le.s32.totalorder 2, %s8
    // Predicated region
    $region33: #{stft_layer_forward.1} parent=5 // pred_check
      %p2508 = pneg %p2507
    $region34: #{stft_layer_forward.1} parent=5 // pred_check_branch
      %2510 = sbr.rel (%p2508) target = $region36
    $region35: #{stft_layer_forward.1} parent=5 // pred_region
      %s2511 = ssub.s32 %s8, 2
      // Predicated region
      $region37: #{stft_layer_forward.1} parent=35 // pred_check
        %p2512 = pneg %p100
      $region38: #{stft_layer_forward.1} parent=35 // pred_check_branch
        %2514 = sbr.rel (%p2512) target = $region40
      $region39: #{stft_layer_forward.1} parent=35 // pred_region
        %s2515 = smul.u32 2, %s20
        %p2516 = scmp.lt.s32.totalorder %s19, 3
        %s2517 = scalar_select %p2516, %s19, 3
        %p2518 = scmp.lt.s32.totalorder %s2515, 1
        %s2519 = scalar_select %p2518, %s2515, 1
        %s2520 = smul.addr %s2517, 64
        %s2521 = sadd.s32 %s2519, %s2520
        %s2522 = smul.addr %s2521, 8
        %s2523 = scalar_lea.vmem %s2, %s2522
      $region40: #{stft_layer_forward.1} parent=35 // pred_fallthru
        _
    $region36: #{stft_layer_forward.1} parent=5 // pred_fallthru
      _
  $region6: #{stft_layer_forward.1} parent=0 // loop_footer
    %s12 = sadd.s32 1, %s8
  $region7: #{stft_layer_forward.1} parent=0 // loop_footer_branch
    %7 = sbr.rel target = $region3
  $region8: #{stft_layer_forward.1} parent=0 // loop_exit
    _

</llo_original>
